<compile_context>
chip_gen: v7x
topology: tpu7x:2x2x1
jax: 0.10.0
libtpu: 0.0.40
codegen_flags: <defaults>
</compile_context>

<pallas_src>
import jax
import jax.numpy as jnp
from jax.experimental import pallas as pl
from jax.experimental.pallas import tpu as pltpu


def _round_up(x: int, m: int) -> int:
    return ((x + m - 1) // m) * m


def _pick_tile(padded_dim: int, cap: int, unit: int):
    """Pick a tile size (a multiple of `unit`) for a dim already padded to `unit`.

    Prefers an exact divisor of `padded_dim` (so no extra zero padding is read
    from HBM); falls back to rounding the dim up to a multiple of `cap` only
    when the exact divisors would make the streamed blocks too small to
    amortize per-grid-step overhead.  Returns (tile, possibly_repadded_dim).
    """
    if padded_dim <= cap:
        return padded_dim, padded_dim
    units, cap_units = padded_dim // unit, cap // unit
    best = 1
    for d in range(cap_units, 0, -1):
        if units % d == 0:
            best = d
            break
    if best * unit >= cap // 2:            # good exact divisor: zero extra pad
        return best * unit, padded_dim
    return cap, _round_up(padded_dim, cap)  # accept a little pad for big blocks


def _centroid_matmul_kernel(x_ref, w_ref, o_ref):
    """One (i, j, k) grid step of out = x @ w.

    The output BlockSpec maps (i, j, k) -> (i, j): invariant along k, so o_ref
    (f32) is resident in VMEM across all k steps and is the accumulator.
    """
    @pl.when(pl.program_id(2) == 0)
    def _():
        o_ref[...] = jnp.zeros_like(o_ref)

    o_ref[...] += jnp.dot(
        x_ref[...], w_ref[...], preferred_element_type=jnp.float32
    )


class CentroidClassifier:
    """Pallas equivalent of the PyTorch CentroidClassifier (forward = x @ W).

    weights: [feature_dim K, num_classes N]. The bf16 cast and 128-multiple
    padding of the weights happen ONCE here (hoisted out of the per-call path).
    """

    def __init__(self, weights, *, cast_to_bf16: bool = True):
        self.weights = jnp.asarray(weights)
        assert self.weights.ndim == 2, "weights must be [feature_dim, num_classes]"
        K, N = self.weights.shape
        self.K, self.N = K, N

        if not jnp.issubdtype(self.weights.dtype, jnp.floating):
            # v7x MXU has no integer path; route non-float weights through XLA.
            self._use_pallas = False
            return
        self._use_pallas = True

        self._cdtype = jnp.bfloat16 if cast_to_bf16 else self.weights.dtype
        ebytes = jnp.dtype(self._cdtype).itemsize
        # ~2-4 MiB weight blocks for bf16; halved K/M caps for f32 so the
        # double-buffered footprint stays <= ~24 MiB (v7x: 64 MiB physical VMEM).
        self._tk_cap = 2048 if ebytes <= 2 else 1024
        self._tn_cap = 1024
        self._tm_cap = 1024 if ebytes <= 2 else 512

        Kp = _round_up(K, 128)
        Np = _round_up(N, 128)
        tk, Kp = _pick_tile(Kp, self._tk_cap, 128)
        tn, Np = _pick_tile(Np, self._tn_cap, 128)
        # If N fits one tile, split into two lane-dense j tiles so v7x's two
        # TensorCores both get work when the batch is a single i-tile — but only
        # while each streamed weight block stays >= ~1 MiB.
        if Np // tn == 1 and tn % 256 == 0 and tk * (tn // 2) * ebytes >= (1 << 20):
            tn //= 2
        self._Kp, self._Np, self._tk, self._tn = Kp, Np, tk, tn

        # Weight cast + zero-pad, done once (not per forward call).
        w = self.weights.astype(self._cdtype)
        if (Kp, Np) != (K, N):
            w = jnp.pad(w, ((0, Kp - K), (0, Np - N)))
        self._w_prepped = w

    def __call__(self, inputs, *, force_pallas: bool = False):
        inputs = jnp.asarray(inputs)
        lead_shape = inputs.shape[:-1]
        K = inputs.shape[-1]
        assert K == self.K, f"inner dims mismatch: {K} vs {self.K}"
        x2d = inputs.reshape(-1, K)
        M = x2d.shape[0]
        out_dtype = jnp.promote_types(inputs.dtype, self.weights.dtype)

        small = (M * self.N * K) < (1 << 20)
        if (not self._use_pallas
                or not jnp.issubdtype(inputs.dtype, jnp.floating)
                or (small and not force_pallas)):
            # Sub-tile / integer problems: a single fused XLA matmul beats
            # pallas_call launch + per-step overhead.
            out = jnp.matmul(x2d, self.weights).astype(out_dtype)
            return out.reshape(*lead_shape, self.N)

        Kp, Np, tk, tn = self._Kp, self._Np, self._tk, self._tn
        Mp = _round_up(M, 16)                      # bf16 packs 2 rows / sublane
        tm, Mp = _pick_tile(Mp, self._tm_cap, 16)

        x = x2d.astype(self._cdtype)
        if (Mp, Kp) != (M, K):
            x = jnp.pad(x, ((0, Mp - M), (0, Kp - K)))
        w = self._w_prepped

        grid = (Mp // tm, Np // tn, Kp // tk)
        ebytes = jnp.dtype(self._cdtype).itemsize
        cost = pl.CostEstimate(
            flops=2 * Mp * Np * Kp,
            transcendentals=0,
            bytes_accessed=(Mp * Kp * ebytes) * (Np // tn)   # x re-read per j tile
                           + (Kp * Np * ebytes) * (Mp // tm) # w re-read per i tile
                           + Mp * Np * 4,                    # f32 output
        )

        out_padded = pl.pallas_call(
            _centroid_matmul_kernel,
            out_shape=jax.ShapeDtypeStruct((Mp, Np), jnp.float32),
            grid_spec=pl.GridSpec(
                grid=grid,
                in_specs=[
                    pl.BlockSpec((tm, tk), lambda i, j, k: (i, k)),
                    pl.BlockSpec((tk, tn), lambda i, j, k: (k, j)),
                ],
                out_specs=pl.BlockSpec((tm, tn), lambda i, j, k: (i, j)),
            ),
            compiler_params=pltpu.CompilerParams(
                dimension_semantics=("parallel", "parallel", "arbitrary"),
                vmem_limit_bytes=32 * 1024 * 1024,
            ),
            cost_estimate=cost,
        )(x, w)

        out = out_padded[:M, :self.N].astype(out_dtype)
        return out.reshape(*lead_shape, self.N)


if __name__ == "__main__":
    key = jax.random.PRNGKey(0)
    k_x, k_w, k_x2, k_w2 = jax.random.split(key, 4)

    # --- Test 1: bf16 fast path, multi-step reduction (grid k > 1). ---------
    # batch=8, feature_dim=4096, num_classes=384  -> tk=2048 (2 k-steps).
    B1, K1, N1 = 8, 4096, 384
    x1 = jax.random.normal(k_x, (B1, K1), dtype=jnp.float32)
    w1 = jax.random.normal(k_w, (K1, N1), dtype=jnp.float32)
    clf1 = CentroidClassifier(w1)                     # bf16 compute (default)
    out1 = jax.block_until_ready(clf1(x1))
    ref1 = jnp.matmul(x1, w1, precision=jax.lax.Precision.HIGHEST)
    assert out1.shape == (B1, N1)
    assert jnp.allclose(out1, ref1, rtol=2e-2, atol=1.0), (
        f"bf16 path mismatch, max abs err = {jnp.max(jnp.abs(out1 - ref1))}"
    )

    # --- Test 2: exact-dtype (f32) Pallas path on a small classifier shape. --
    # batch=8, feature_dim=384, num_classes=10 (non-128-multiple N -> padding).
    B2, K2, N2 = 8, 384, 10
    x2 = jax.random.normal(k_x2, (B2, K2), dtype=jnp.float32)
    w2 = jax.random.normal(k_w2, (K2, N2), dtype=jnp.float32)
    clf2 = CentroidClassifier(w2, cast_to_bf16=False)  # no bf16 downcast
    out2 = jax.block_until_ready(clf2(x2, force_pallas=True))
    ref2 = jnp.matmul(x2, w2, precision=jax.lax.Precision.HIGHEST)
    assert out2.shape == (B2, N2)
    assert jnp.allclose(out2, ref2, rtol=2e-2, atol=0.5), (
        f"f32 path mismatch, max abs err = {jnp.max(jnp.abs(out2 - ref2))}"
    )

    # --- Test 3: tiny-problem dispatch path (plain XLA matmul). -------------
    out3 = jax.block_until_ready(clf2(x2))            # no force -> XLA fallback
    assert jnp.allclose(out3, jnp.matmul(x2, w2), atol=1e-5, rtol=1e-5)

    print("KERNEL_OK")
</pallas_src>

<mosaic_0001>
module attributes {stable_mosaic.version = 11 : i64} {
  func.func @_centroid_matmul_kernel(%arg0: i32, %arg1: i32, %arg2: i32, %arg3: memref<16x2048xbf16, #tpu.memory_space<vmem>>, %arg4: memref<2048x384xbf16, #tpu.memory_space<vmem>>, %arg5: memref<16x384xf32, #tpu.memory_space<vmem>>) attributes {dimension_semantics = [#tpu.dimension_semantics<parallel>, #tpu.dimension_semantics<parallel>, #tpu.dimension_semantics<arbitrary>], iteration_bounds = array<i64: 1, 1, 2>, scalar_prefetch = 0 : i64, scratch_operands = 0 : i64, tpu.core_type = #tpu.core_type<tc>, window_params = [{transform_indices = @transform_0, window_bounds = array<i64: 16, 2048>}, {transform_indices = @transform_1, window_bounds = array<i64: 2048, 384>}, {transform_indices = @transform_2, window_bounds = array<i64: 16, 384>}]} {
    %c0_i32 = arith.constant 0 : i32
    %0 = arith.cmpi eq, %arg2, %c0_i32 : i32
    %1 = arith.extui %0 : i1 to i32
    %c0_i32_0 = arith.constant 0 : i32
    %2 = arith.cmpi ne, %1, %c0_i32_0 : i32
    scf.if %2 {
      %cst_8 = arith.constant 0.000000e+00 : f32
      %9 = vector.broadcast %cst_8 : f32 to vector<16x384xf32>
      %c0_9 = arith.constant 0 : index
      %c0_10 = arith.constant 0 : index
      %10 = vector.load %arg5[%c0_9, %c0_10] : memref<16x384xf32, #tpu.memory_space<vmem>>, vector<16x384xf32>
      tpu.vector_store %arg5[%c0_9, %c0_10], %9 {strides = array<i32>} : memref<16x384xf32, #tpu.memory_space<vmem>>, vector<16x384xf32>,
    } else {
    }
    %c0 = arith.constant 0 : index
    %c0_1 = arith.constant 0 : index
    %3 = vector.load %arg5[%c0, %c0_1] : memref<16x384xf32, #tpu.memory_space<vmem>>, vector<16x384xf32>
    %c0_2 = arith.constant 0 : index
    %c0_3 = arith.constant 0 : index
    %4 = vector.load %arg3[%c0_2, %c0_3] : memref<16x2048xbf16, #tpu.memory_space<vmem>>, vector<16x2048xbf16>
    %c0_4 = arith.constant 0 : index
    %c0_5 = arith.constant 0 : index
    %5 = vector.load %arg4[%c0_4, %c0_5] : memref<2048x384xbf16, #tpu.memory_space<vmem>>, vector<2048x384xbf16>
    %cst = arith.constant dense<0.000000e+00> : vector<16x384xf32>
    %6 = tpu.matmul %4, %5, %cst {dimension_numbers = #tpu.dot_dimension_numbers<[1], [0], [0], [1], [0, 0, 1, 1], [], []>} : vector<16x2048xbf16>, vector<2048x384xbf16>, vector<16x384xf32> -> vector<16x384xf32>
    %7 = arith.addf %3, %6 : vector<16x384xf32>
    %c0_6 = arith.constant 0 : index
    %c0_7 = arith.constant 0 : index
    %8 = vector.load %arg5[%c0_6, %c0_7] : memref<16x384xf32, #tpu.memory_space<vmem>>, vector<16x384xf32>
    tpu.vector_store %arg5[%c0_6, %c0_7], %7 {strides = array<i32>} : memref<16x384xf32, #tpu.memory_space<vmem>>, vector<16x384xf32>,
    return
  }
  func.func @transform_0(%arg0: i32, %arg1: i32, %arg2: i32) -> (i32, i32) {
    %c0_i32 = arith.constant 0 : i32
    return %arg0, %arg2 : i32, i32
  }
  func.func @transform_1(%arg0: i32, %arg1: i32, %arg2: i32) -> (i32, i32) {
    %c0_i32 = arith.constant 0 : i32
    return %arg2, %arg1 : i32, i32
  }
  func.func @transform_2(%arg0: i32, %arg1: i32, %arg2: i32) -> (i32, i32) {
    %c0_i32 = arith.constant 0 : i32
    return %arg0, %arg1 : i32, i32
  }
}

</mosaic_0001>

<llo_original>
// kernel: tpu_custom_call.1
$region0: #{tpu_custom_call.1}
  #allocation0 [shape = 'u32[]', space=smem, size = 0x4, offset = 0x4, fixed_abs, tag = 'smem constant byte address 0x4 - core index']
  #allocation1 [shape = 'u32[144,128]{1,0:T(1,128)}', space=vmem, size = 0x12000, scoped, tag = 'internal scratch']
  %s0 = inlined_call_operand.hbm [shape: bf16[16,4096], index: 0, kind: input, shape index: {}]
  %s1 = inlined_call_operand.hbm [shape: bf16[4096,384], index: 1, kind: input, shape index: {}]
  %s2 = inlined_call_operand.hbm [shape: f32[16,384], index: 2, kind: output, shape index: {}]
  %s3 = sld [smem:[#allocation0]]
  $region53: #{tpu_custom_call.1} parent=0
    _
  %s5 = ssub.s32 1, %s3
  %s6 = scalar_select 0, %s5, %s3
  $region1: #{tpu_custom_call.1} parent=0
    #allocation2 [shape = 'u8[131072]{0}', space=vmem, size = 0x20000, scoped, tag = 'input window, operand 0']
    #allocation3 [shape = 's32[2]{0}', space=sflag, size = 0x8, scoped, tag = 'scoped memory for tpu_custom_call.1']
    #allocation4 [shape = 's32[2]{0}', space=sflag, size = 0x8, scoped, tag = 'scoped memory for tpu_custom_call.1']
    #allocation5 [shape = 'u8[3145728]{0}', space=vmem, size = 0x300000, scoped, tag = 'input window, operand 1']
    #allocation6 [shape = 's32[2]{0}', space=sflag, size = 0x8, scoped, tag = 'scoped memory for tpu_custom_call.1']
    #allocation7 [shape = 'u8[24576]{0}', space=vmem, size = 0x6000, scoped, tag = 'output window, operand 0, single buffered']
    %7 = vsyncpa [#allocation3], 0
    %s8 = scalar_lea.sflag [#allocation3], 1
    %9 = vsyncpa %s8, 0
    %10 = vsyncpa [#allocation6], 0
    %s11 = scalar_lea.sflag [#allocation6], 1
    %12 = vsyncpa %s11, 0
    %13 = vsyncpa [#allocation4], 0
    loop: start=0, step=1, limit=4
    $region2: #{tpu_custom_call.1} parent=1 // loop_pre_header
      _
    $region3: #{tpu_custom_call.1} parent=1 // loop_header
      %s15 = sphi 0, %s19
      %p16 = scmp.ge.s32.totalorder %s15, 4
      %s22 = sphi 0, %s41
      %s23 = sphi 0, %s37
      %s24 = sphi 0, %s33
      %s25 = sphi 0, %s22
      %s26 = sphi 0, %s23
      %s27 = sphi 0, %s24
      %s28 = sphi 0, %s25
      %s29 = sphi 0, %s26
      %s30 = sphi 0, %s27
      %s46 = sphi 0, %s48
      %s49 = sphi 0, %s46
      %s50 = sphi 0, %s49
      %s66 = sphi 0, %s50
      %s74 = sphi 0, %s76
      %s77 = sphi 0, %s74
      %s78 = sphi 0, %s77
      %s94 = sphi 0, %s78
      %s102 = sphi 0, %s104
      %s105 = sphi 0, %s102
      %s106 = sphi 0, %s105
      %s122 = sphi 0, %s106
    $region4: #{tpu_custom_call.1} parent=1 // loop_header_branch
      %18 = sbr.rel (%p16) target = $region8
    $region5: #{tpu_custom_call.1} parent=1 // loop_body
      %s20 = ssub.s32 %s15, 1
      %s21 = ssub.s32 %s15, 2
      %s31 = sadd.s32 1, %s24
      %p32 = scmp.ge.s32.totalorder %s31, 2
      %s33 = scalar_select %p32, 0, %s31
      %s34 = sadd.s32 1, %s23
      %s35 = scalar_select %p32, %s34, %s23
      %p36 = scmp.ge.s32.totalorder %s35, 1
      %s37 = scalar_select %p36, 0, %s35
      %s38 = sadd.s32 1, %s22
      %s39 = scalar_select %p36, %s38, %s22
      %p40 = scmp.ge.s32.totalorder %s39, 1
      %s41 = scalar_select %p40, 0, %s39
      %s42 = ssub.s32 %s22, %s41
      %s43 = ssub.s32 %s24, %s33
      %s44 = sor.u32 %s42, %s43
      %p45 = scmp.eq.s32.totalorder %s44, 0
      %s47 = sadd.s32 %s46, 1
      %s48 = scalar_select %p45, %s46, %s47
      %p51 = pneg %p45
      %p52 = scmp.eq.s32.totalorder %s15, 1
      %p53 = por %p51, %p52
      %p54 = scmp.ne.s32.totalorder %s46, %s49
      %p55 = scmp.eq.s32.totalorder %s15, 0
      %p56 = por %p54, %p55
      %p57 = scmp.ne.s32.totalorder %s46, %s49
      %p58 = scmp.eq.s32.totalorder %s20, 1
      %p59 = por %p57, %p58
      %p60 = scmp.ne.s32.totalorder %s49, %s50
      %p61 = scmp.eq.s32.totalorder %s20, 0
      %p62 = por %p60, %p61
      %p63 = scmp.ne.s32.totalorder %s49, %s50
      %p64 = scmp.eq.s32.totalorder %s21, 1
      %p65 = por %p63, %p64
      %p67 = scmp.ne.s32.totalorder %s50, %s66
      %p68 = scmp.eq.s32.totalorder %s21, 0
      %p69 = por %p67, %p68
      %s70 = ssub.s32 %s24, %s33
      %s71 = ssub.s32 %s23, %s37
      %s72 = sor.u32 %s70, %s71
      %p73 = scmp.eq.s32.totalorder %s72, 0
      %s75 = sadd.s32 %s74, 1
      %s76 = scalar_select %p73, %s74, %s75
      %p79 = pneg %p73
      %p80 = scmp.eq.s32.totalorder %s15, 1
      %p81 = por %p79, %p80
      %p82 = scmp.ne.s32.totalorder %s74, %s77
      %p83 = scmp.eq.s32.totalorder %s15, 0
      %p84 = por %p82, %p83
      %p85 = scmp.ne.s32.totalorder %s74, %s77
      %p86 = scmp.eq.s32.totalorder %s20, 1
      %p87 = por %p85, %p86
      %p88 = scmp.ne.s32.totalorder %s77, %s78
      %p89 = scmp.eq.s32.totalorder %s20, 0
      %p90 = por %p88, %p89
      %p91 = scmp.ne.s32.totalorder %s77, %s78
      %p92 = scmp.eq.s32.totalorder %s21, 1
      %p93 = por %p91, %p92
      %p95 = scmp.ne.s32.totalorder %s78, %s94
      %p96 = scmp.eq.s32.totalorder %s21, 0
      %p97 = por %p95, %p96
      %s98 = ssub.s32 %s22, %s41
      %s99 = ssub.s32 %s23, %s37
      %s100 = sor.u32 %s98, %s99
      %p101 = scmp.eq.s32.totalorder %s100, 0
      %s103 = sadd.s32 %s102, 1
      %s104 = scalar_select %p101, %s102, %s103
      %p107 = pneg %p101
      %p108 = scmp.eq.s32.totalorder %s15, 1
      %p109 = por %p107, %p108
      %p110 = scmp.ne.s32.totalorder %s102, %s105
      %p111 = scmp.eq.s32.totalorder %s15, 0
      %p112 = por %p110, %p111
      %p113 = scmp.ne.s32.totalorder %s102, %s105
      %p114 = scmp.eq.s32.totalorder %s20, 1
      %p115 = por %p113, %p114
      %p116 = scmp.ne.s32.totalorder %s105, %s106
      %p117 = scmp.eq.s32.totalorder %s20, 0
      %p118 = por %p116, %p117
      %p119 = scmp.ne.s32.totalorder %s105, %s106
      %p120 = scmp.eq.s32.totalorder %s21, 1
      %p121 = por %p119, %p120
      %p123 = scmp.ne.s32.totalorder %s106, %s122
      %p124 = scmp.eq.s32.totalorder %s21, 0
      %p125 = por %p123, %p124
      %p126 = scmp.le.s32.totalorder 1, %s15
      %p127 = scmp.lt.s32.totalorder %s15, 3
      %p128 = pnand %p126, %p127
      %p129 = pneg %p128
      // Predicated region
      $region9: #{tpu_custom_call.1} parent=5 // pred_check
        _
      $region10: #{tpu_custom_call.1} parent=5 // pred_check_branch
        %131 = sbr.rel (%p128) target = $region12
      $region11: #{tpu_custom_call.1} parent=5 // pred_region
        %s132 = ssub.s32 %s15, 1
      $region12: #{tpu_custom_call.1} parent=5 // pred_fallthru
        _
      %p133 = scmp.lt.s32.totalorder %s15, 2
      // Predicated region
      $region13: #{tpu_custom_call.1} parent=5 // pred_check
        %p134 = pneg %p133
      $region14: #{tpu_custom_call.1} parent=5 // pred_check_branch
        %136 = sbr.rel (%p134) target = $region16
      $region15: #{tpu_custom_call.1} parent=5 // pred_region
        // Predicated region
        $region17: #{tpu_custom_call.1} parent=15 // pred_check
          %p137 = pneg %p56
        $region18: #{tpu_custom_call.1} parent=15 // pred_check_branch
          %139 = sbr.rel (%p137) target = $region20
        $region19: #{tpu_custom_call.1} parent=15 // pred_region
          %s140 = sand.u32 %s46, 1
          %s141 = scalar_lea.sflag [#allocation3], %s140
          %s142 = sand.u32 %s46, 1
          %s143 = smul.addr %s142, 128
          %s144 = scalar_lea.vmem [#allocation2], %s143
          %s145 = smul.u32 2, %s22
          %s146 = smul.u32 16, %s24
          %s148 = ssub.s32 2048, 2048
          %149 = vsyncadd %s141, %s148
          %s150 = smul.addr %s145, 32
          %s151 = sadd.s32 %s146, %s150
          %s152 = smul.addr %s151, 64
          %s153 = scalar_lea.hbm %s0, %s152
          %s154 = sshll.u32 %s144, 4
          %s155 = int_to_ptr.vmem [resolvable:$true] %s154
          %160 = dma.hbm_to_vmem [thread:$0]  %s153, 2048, %s155, %s141, 2048, 1024, 64
        $region20: #{tpu_custom_call.1} parent=15 // pred_fallthru
          _
        // Predicated region
        $region21: #{tpu_custom_call.1} parent=15 // pred_check
          %p161 = pneg %p84
        $region22: #{tpu_custom_call.1} parent=15 // pred_check_branch
          %163 = sbr.rel (%p161) target = $region24
        $region23: #{tpu_custom_call.1} parent=15 // pred_region
          %s164 = sand.u32 %s74, 1
          %s165 = scalar_lea.sflag [#allocation6], %s164
          %s166 = sand.u32 %s74, 1
          %s167 = smul.addr %s166, 3072
          %s168 = scalar_lea.vmem [#allocation5], %s167
          %s169 = smul.u32 256, %s24
          %s170 = smul.u32 3, %s23
          %s172 = ssub.s32 49152, 49152
          %173 = vsyncadd %s165, %s172
          %s174 = smul.addr %s169, 3
          %s175 = sadd.s32 %s170, %s174
          %s176 = smul.addr %s175, 64
          %s177 = scalar_lea.hbm %s1, %s176
          %s178 = sshll.u32 %s168, 4
          %s179 = int_to_ptr.vmem [resolvable:$true] %s178
          %184 = dma.hbm_to_vmem [thread:$0]  %s177, 49152, %s179, %s165, 192, 192, 12
        $region24: #{tpu_custom_call.1} parent=15 // pred_fallthru
          _
      $region16: #{tpu_custom_call.1} parent=5 // pred_fallthru
        _
      %p185 = scmp.le.s32.totalorder 1, %s15
      %p186 = scmp.lt.s32.totalorder %s15, 3
      %p187 = pnand %p185, %p186
      %p188 = pneg %p187
      // Predicated region
      $region25: #{tpu_custom_call.1} parent=5 // pred_check
        _
      $region26: #{tpu_custom_call.1} parent=5 // pred_check_branch
        %190 = sbr.rel (%p187) target = $region28
      $region27: #{tpu_custom_call.1} parent=5 // pred_region
        %s191 = ssub.s32 %s15, 1
        %s192 = sand.u32 %s49, 1
        %s193 = scalar_lea.sflag [#allocation3], %s192
        %s194 = sand.u32 %s49, 1
        %s195 = smul.addr %s194, 128
        %s196 = scalar_lea.vmem [#allocation2], %s195
        // Predicated region
        $region29: #{tpu_custom_call.1} parent=27 // pred_check
          %p197 = pneg %p62
        $region30: #{tpu_custom_call.1} parent=27 // pred_check_branch
          %199 = sbr.rel (%p197) target = $region32
        $region31: #{tpu_custom_call.1} parent=27 // pred_region
          %200 = dma.done %s193, 2048
        $region32: #{tpu_custom_call.1} parent=27 // pred_fallthru
          _
        %s201 = sand.u32 %s77, 1
        %s202 = scalar_lea.sflag [#allocation6], %s201
        %s203 = sand.u32 %s77, 1
        %s204 = smul.addr %s203, 3072
        %s205 = scalar_lea.vmem [#allocation5], %s204
        // Predicated region
        $region33: #{tpu_custom_call.1} parent=27 // pred_check
          %p206 = pneg %p90
        $region34: #{tpu_custom_call.1} parent=27 // pred_check_branch
          %208 = sbr.rel (%p206) target = $region36
        $region35: #{tpu_custom_call.1} parent=27 // pred_region
          %209 = dma.done %s202, 49152
        $region36: #{tpu_custom_call.1} parent=27 // pred_fallthru
          _
        %s210 = sand.u32 %s49, 1
        %s211 = scalar_lea.sflag [#allocation3], %s210
        %s212 = sand.u32 %s49, 1
        %s213 = smul.addr %s212, 128
        %s214 = scalar_lea.vmem [#allocation2], %s213
        %p215 = pneg %p62
        %p216 = pneg %p59
        %s217 = sand.u32 %s77, 1
        %s218 = scalar_lea.sflag [#allocation6], %s217
        %s219 = sand.u32 %s77, 1
        %s220 = smul.addr %s219, 3072
        %s221 = scalar_lea.vmem [#allocation5], %s220
        %p222 = pneg %p90
        %p223 = pneg %p87
        %p224 = pneg %p118
        %p225 = pneg %p115
        %s226 = smul.u32 2, %s25
        %s227 = smul.u32 16, %s27
        %s228 = smul.u32 256, %s27
        %s229 = smul.u32 3, %s26
        %s230 = smul.u32 2, %s25
        %s231 = smul.u32 3, %s26
        %p233 = scmp.eq.s32.totalorder %s27, 0
        // Predicated region
        $region37: #{tpu_custom_call.1} parent=27 // pred_check
          %p234 = pneg %p233
        $region38: #{tpu_custom_call.1} parent=27 // pred_check_branch
          %236 = sbr.rel (%p234) target = $region40
        $region39: #{tpu_custom_call.1} parent=27 // pred_region
          %237 = vst [vmem:[#allocation7] sm:$0xff] 0.0
          %238 = vst [vmem:[#allocation7 + $0x8] sm:$0xff] 0.0
          %239 = vst [vmem:[#allocation7 + $0x10] sm:$0xff] 0.0
          %240 = vst [vmem:[#allocation7 + $0x18] sm:$0xff] 0.0
          %241 = vst [vmem:[#allocation7 + $0x20] sm:$0xff] 0.0
          %242 = vst [vmem:[#allocation7 + $0x28] sm:$0xff] 0.0
        $region40: #{tpu_custom_call.1} parent=27 // pred_fallthru
          _
        %v243 = vld [vmem:[#allocation7] sm:$0xff]
        %v244 = vld [vmem:[#allocation7 + $0x8] sm:$0xff]
        %v245 = vld [vmem:[#allocation7 + $0x10] sm:$0xff]
        %v246 = vld [vmem:[#allocation7 + $0x18] sm:$0xff]
        %v247 = vld [vmem:[#allocation7 + $0x20] sm:$0xff]
        %v248 = vld [vmem:[#allocation7 + $0x28] sm:$0xff]
        %v249 = vld [vmem:[%s196] sm:$0xff]
        %v250 = vld [vmem:[%s196 + $0x8] sm:$0xff]
        %v251 = vld [vmem:[%s196 + $0x10] sm:$0xff]
        %v252 = vld [vmem:[%s196 + $0x18] sm:$0xff]
        %v253 = vld [vmem:[%s196 + $0x20] sm:$0xff]
        %v254 = vld [vmem:[%s196 + $0x28] sm:$0xff]
        %v255 = vld [vmem:[%s196 + $0x30] sm:$0xff]
        %v256 = vld [vmem:[%s196 + $0x38] sm:$0xff]
        %v257 = vld [vmem:[%s196 + $0x40] sm:$0xff]
        %v258 = vld [vmem:[%s196 + $0x48] sm:$0xff]
        %v259 = vld [vmem:[%s196 + $0x50] sm:$0xff]
        %v260 = vld [vmem:[%s196 + $0x58] sm:$0xff]
        %v261 = vld [vmem:[%s196 + $0x60] sm:$0xff]
        %v262 = vld [vmem:[%s196 + $0x68] sm:$0xff]
        %v263 = vld [vmem:[%s196 + $0x70] sm:$0xff]
        %v264 = vld [vmem:[%s196 + $0x78] sm:$0xff]
        %v265 = vld [vmem:[%s205] sm:$0xff]
        %v266 = vld [vmem:[%s205 + $0x8] sm:$0xf]
        %v267 = vld [vmem:[%s205 + $0xc] sm:$0xff]
        %v268 = vld [vmem:[%s205 + $0x14] sm:$0xf]
        %v269 = vld [vmem:[%s205 + $0x18] sm:$0xff]
        %v270 = vld [vmem:[%s205 + $0x20] sm:$0xf]
        %v271 = vld [vmem:[%s205 + $0x24] sm:$0xff]
        %v272 = vld [vmem:[%s205 + $0x2c] sm:$0xf]
        %v273 = vld [vmem:[%s205 + $0x30] sm:$0xff]
        %v274 = vld [vmem:[%s205 + $0x38] sm:$0xf]
        %v275 = vld [vmem:[%s205 + $0x3c] sm:$0xff]
        %v276 = vld [vmem:[%s205 + $0x44] sm:$0xf]
        %v277 = vld [vmem:[%s205 + $0x48] sm:$0xff]
        %v278 = vld [vmem:[%s205 + $0x50] sm:$0xf]
        %v279 = vld [vmem:[%s205 + $0x54] sm:$0xff]
        %v280 = vld [vmem:[%s205 + $0x5c] sm:$0xf]
        %v281 = vld [vmem:[%s205 + $0x60] sm:$0xff]
        %v282 = vld [vmem:[%s205 + $0x68] sm:$0xf]
        %v283 = vld [vmem:[%s205 + $0x6c] sm:$0xff]
        %v284 = vld [vmem:[%s205 + $0x74] sm:$0xf]
        %v285 = vld [vmem:[%s205 + $0x78] sm:$0xff]
        %v286 = vld [vmem:[%s205 + $0x80] sm:$0xf]
        %v287 = vld [vmem:[%s205 + $0x84] sm:$0xff]
        %v288 = vld [vmem:[%s205 + $0x8c] sm:$0xf]
        %v289 = vld [vmem:[%s205 + $0x90] sm:$0xff]
        %v290 = vld [vmem:[%s205 + $0x98] sm:$0xf]
        %v291 = vld [vmem:[%s205 + $0x9c] sm:$0xff]
        %v292 = vld [vmem:[%s205 + $0xa4] sm:$0xf]
        %v293 = vld [vmem:[%s205 + $0xa8] sm:$0xff]
        %v294 = vld [vmem:[%s205 + $0xb0] sm:$0xf]
        %v295 = vld [vmem:[%s205 + $0xb4] sm:$0xff]
        %v296 = vld [vmem:[%s205 + $0xbc] sm:$0xf]
        %v297 = vld [vmem:[%s205 + $0xc0] sm:$0xff]
        %v298 = vld [vmem:[%s205 + $0xc8] sm:$0xf]
        %v299 = vld [vmem:[%s205 + $0xcc] sm:$0xff]
        %v300 = vld [vmem:[%s205 + $0xd4] sm:$0xf]
        %v301 = vld [vmem:[%s205 + $0xd8] sm:$0xff]
        %v302 = vld [vmem:[%s205 + $0xe0] sm:$0xf]
        %v303 = vld [vmem:[%s205 + $0xe4] sm:$0xff]
        %v304 = vld [vmem:[%s205 + $0xec] sm:$0xf]
        %v305 = vld [vmem:[%s205 + $0xf0] sm:$0xff]
        %v306 = vld [vmem:[%s205 + $0xf8] sm:$0xf]
        %v307 = vld [vmem:[%s205 + $0xfc] sm:$0xff]
        %v308 = vld [vmem:[%s205 + $0x104] sm:$0xf]
        %v309 = vld [vmem:[%s205 + $0x108] sm:$0xff]
        %v310 = vld [vmem:[%s205 + $0x110] sm:$0xf]
        %v311 = vld [vmem:[%s205 + $0x114] sm:$0xff]
        %v312 = vld [vmem:[%s205 + $0x11c] sm:$0xf]
        %v313 = vld [vmem:[%s205 + $0x120] sm:$0xff]
        %v314 = vld [vmem:[%s205 + $0x128] sm:$0xf]
        %v315 = vld [vmem:[%s205 + $0x12c] sm:$0xff]
        %v316 = vld [vmem:[%s205 + $0x134] sm:$0xf]
        %v317 = vld [vmem:[%s205 + $0x138] sm:$0xff]
        %v318 = vld [vmem:[%s205 + $0x140] sm:$0xf]
        %v319 = vld [vmem:[%s205 + $0x144] sm:$0xff]
        %v320 = vld [vmem:[%s205 + $0x14c] sm:$0xf]
        %v321 = vld [vmem:[%s205 + $0x150] sm:$0xff]
        %v322 = vld [vmem:[%s205 + $0x158] sm:$0xf]
        %v323 = vld [vmem:[%s205 + $0x15c] sm:$0xff]
        %v324 = vld [vmem:[%s205 + $0x164] sm:$0xf]
        %v325 = vld [vmem:[%s205 + $0x168] sm:$0xff]
        %v326 = vld [vmem:[%s205 + $0x170] sm:$0xf]
        %v327 = vld [vmem:[%s205 + $0x174] sm:$0xff]
        %v328 = vld [vmem:[%s205 + $0x17c] sm:$0xf]
        %v329 = vld [vmem:[%s205 + $0x180] sm:$0xff]
        %v330 = vld [vmem:[%s205 + $0x188] sm:$0xf]
        %v331 = vld [vmem:[%s205 + $0x18c] sm:$0xff]
        %v332 = vld [vmem:[%s205 + $0x194] sm:$0xf]
        %v333 = vld [vmem:[%s205 + $0x198] sm:$0xff]
        %v334 = vld [vmem:[%s205 + $0x1a0] sm:$0xf]
        %v335 = vld [vmem:[%s205 + $0x1a4] sm:$0xff]
        %v336 = vld [vmem:[%s205 + $0x1ac] sm:$0xf]
        %v337 = vld [vmem:[%s205 + $0x1b0] sm:$0xff]
        %v338 = vld [vmem:[%s205 + $0x1b8] sm:$0xf]
        %v339 = vld [vmem:[%s205 + $0x1bc] sm:$0xff]
        %v340 = vld [vmem:[%s205 + $0x1c4] sm:$0xf]
        %v341 = vld [vmem:[%s205 + $0x1c8] sm:$0xff]
        %v342 = vld [vmem:[%s205 + $0x1d0] sm:$0xf]
        %v343 = vld [vmem:[%s205 + $0x1d4] sm:$0xff]
        %v344 = vld [vmem:[%s205 + $0x1dc] sm:$0xf]
        %v345 = vld [vmem:[%s205 + $0x1e0] sm:$0xff]
        %v346 = vld [vmem:[%s205 + $0x1e8] sm:$0xf]
        %v347 = vld [vmem:[%s205 + $0x1ec] sm:$0xff]
        %v348 = vld [vmem:[%s205 + $0x1f4] sm:$0xf]
        %v349 = vld [vmem:[%s205 + $0x1f8] sm:$0xff]
        %v350 = vld [vmem:[%s205 + $0x200] sm:$0xf]
        %v351 = vld [vmem:[%s205 + $0x204] sm:$0xff]
        %v352 = vld [vmem:[%s205 + $0x20c] sm:$0xf]
        %v353 = vld [vmem:[%s205 + $0x210] sm:$0xff]
        %v354 = vld [vmem:[%s205 + $0x218] sm:$0xf]
        %v355 = vld [vmem:[%s205 + $0x21c] sm:$0xff]
        %v356 = vld [vmem:[%s205 + $0x224] sm:$0xf]
        %v357 = vld [vmem:[%s205 + $0x228] sm:$0xff]
        %v358 = vld [vmem:[%s205 + $0x230] sm:$0xf]
        %v359 = vld [vmem:[%s205 + $0x234] sm:$0xff]
        %v360 = vld [vmem:[%s205 + $0x23c] sm:$0xf]
        %v361 = vld [vmem:[%s205 + $0x240] sm:$0xff]
        %v362 = vld [vmem:[%s205 + $0x248] sm:$0xf]
        %v363 = vld [vmem:[%s205 + $0x24c] sm:$0xff]
        %v364 = vld [vmem:[%s205 + $0x254] sm:$0xf]
        %v365 = vld [vmem:[%s205 + $0x258] sm:$0xff]
        %v366 = vld [vmem:[%s205 + $0x260] sm:$0xf]
        %v367 = vld [vmem:[%s205 + $0x264] sm:$0xff]
        %v368 = vld [vmem:[%s205 + $0x26c] sm:$0xf]
        %v369 = vld [vmem:[%s205 + $0x270] sm:$0xff]
        %v370 = vld [vmem:[%s205 + $0x278] sm:$0xf]
        %v371 = vld [vmem:[%s205 + $0x27c] sm:$0xff]
        %v372 = vld [vmem:[%s205 + $0x284] sm:$0xf]
        %v373 = vld [vmem:[%s205 + $0x288] sm:$0xff]
        %v374 = vld [vmem:[%s205 + $0x290] sm:$0xf]
        %v375 = vld [vmem:[%s205 + $0x294] sm:$0xff]
        %v376 = vld [vmem:[%s205 + $0x29c] sm:$0xf]
        %v377 = vld [vmem:[%s205 + $0x2a0] sm:$0xff]
        %v378 = vld [vmem:[%s205 + $0x2a8] sm:$0xf]
        %v379 = vld [vmem:[%s205 + $0x2ac] sm:$0xff]
        %v380 = vld [vmem:[%s205 + $0x2b4] sm:$0xf]
        %v381 = vld [vmem:[%s205 + $0x2b8] sm:$0xff]
        %v382 = vld [vmem:[%s205 + $0x2c0] sm:$0xf]
        %v383 = vld [vmem:[%s205 + $0x2c4] sm:$0xff]
        %v384 = vld [vmem:[%s205 + $0x2cc] sm:$0xf]
        %v385 = vld [vmem:[%s205 + $0x2d0] sm:$0xff]
        %v386 = vld [vmem:[%s205 + $0x2d8] sm:$0xf]
        %v387 = vld [vmem:[%s205 + $0x2dc] sm:$0xff]
        %v388 = vld [vmem:[%s205 + $0x2e4] sm:$0xf]
        %v389 = vld [vmem:[%s205 + $0x2e8] sm:$0xff]
        %v390 = vld [vmem:[%s205 + $0x2f0] sm:$0xf]
        %v391 = vld [vmem:[%s205 + $0x2f4] sm:$0xff]
        %v392 = vld [vmem:[%s205 + $0x2fc] sm:$0xf]
        %v393 = vld [vmem:[%s205 + $0x300] sm:$0xff]
        %v394 = vld [vmem:[%s205 + $0x308] sm:$0xf]
        %v395 = vld [vmem:[%s205 + $0x30c] sm:$0xff]
        %v396 = vld [vmem:[%s205 + $0x314] sm:$0xf]
        %v397 = vld [vmem:[%s205 + $0x318] sm:$0xff]
        %v398 = vld [vmem:[%s205 + $0x320] sm:$0xf]
        %v399 = vld [vmem:[%s205 + $0x324] sm:$0xff]
        %v400 = vld [vmem:[%s205 + $0x32c] sm:$0xf]
        %v401 = vld [vmem:[%s205 + $0x330] sm:$0xff]
        %v402 = vld [vmem:[%s205 + $0x338] sm:$0xf]
        %v403 = vld [vmem:[%s205 + $0x33c] sm:$0xff]
        %v404 = vld [vmem:[%s205 + $0x344] sm:$0xf]
        %v405 = vld [vmem:[%s205 + $0x348] sm:$0xff]
        %v406 = vld [vmem:[%s205 + $0x350] sm:$0xf]
        %v407 = vld [vmem:[%s205 + $0x354] sm:$0xff]
        %v408 = vld [vmem:[%s205 + $0x35c] sm:$0xf]
        %v409 = vld [vmem:[%s205 + $0x360] sm:$0xff]
        %v410 = vld [vmem:[%s205 + $0x368] sm:$0xf]
        %v411 = vld [vmem:[%s205 + $0x36c] sm:$0xff]
        %v412 = vld [vmem:[%s205 + $0x374] sm:$0xf]
        %v413 = vld [vmem:[%s205 + $0x378] sm:$0xff]
        %v414 = vld [vmem:[%s205 + $0x380] sm:$0xf]
        %v415 = vld [vmem:[%s205 + $0x384] sm:$0xff]
        %v416 = vld [vmem:[%s205 + $0x38c] sm:$0xf]
        %v417 = vld [vmem:[%s205 + $0x390] sm:$0xff]
        %v418 = vld [vmem:[%s205 + $0x398] sm:$0xf]
        %v419 = vld [vmem:[%s205 + $0x39c] sm:$0xff]
        %v420 = vld [vmem:[%s205 + $0x3a4] sm:$0xf]
        %v421 = vld [vmem:[%s205 + $0x3a8] sm:$0xff]
        %v422 = vld [vmem:[%s205 + $0x3b0] sm:$0xf]
        %v423 = vld [vmem:[%s205 + $0x3b4] sm:$0xff]
        %v424 = vld [vmem:[%s205 + $0x3bc] sm:$0xf]
        %v425 = vld [vmem:[%s205 + $0x3c0] sm:$0xff]
        %v426 = vld [vmem:[%s205 + $0x3c8] sm:$0xf]
        %v427 = vld [vmem:[%s205 + $0x3cc] sm:$0xff]
        %v428 = vld [vmem:[%s205 + $0x3d4] sm:$0xf]
        %v429 = vld [vmem:[%s205 + $0x3d8] sm:$0xff]
        %v430 = vld [vmem:[%s205 + $0x3e0] sm:$0xf]
        %v431 = vld [vmem:[%s205 + $0x3e4] sm:$0xff]
        %v432 = vld [vmem:[%s205 + $0x3ec] sm:$0xf]
        %v433 = vld [vmem:[%s205 + $0x3f0] sm:$0xff]
        %v434 = vld [vmem:[%s205 + $0x3f8] sm:$0xf]
        %v435 = vld [vmem:[%s205 + $0x3fc] sm:$0xff]
        %v436 = vld [vmem:[%s205 + $0x404] sm:$0xf]
        %v437 = vld [vmem:[%s205 + $0x408] sm:$0xff]
        %v438 = vld [vmem:[%s205 + $0x410] sm:$0xf]
        %v439 = vld [vmem:[%s205 + $0x414] sm:$0xff]
        %v440 = vld [vmem:[%s205 + $0x41c] sm:$0xf]
        %v441 = vld [vmem:[%s205 + $0x420] sm:$0xff]
        %v442 = vld [vmem:[%s205 + $0x428] sm:$0xf]
        %v443 = vld [vmem:[%s205 + $0x42c] sm:$0xff]
        %v444 = vld [vmem:[%s205 + $0x434] sm:$0xf]
        %v445 = vld [vmem:[%s205 + $0x438] sm:$0xff]
        %v446 = vld [vmem:[%s205 + $0x440] sm:$0xf]
        %v447 = vld [vmem:[%s205 + $0x444] sm:$0xff]
        %v448 = vld [vmem:[%s205 + $0x44c] sm:$0xf]
        %v449 = vld [vmem:[%s205 + $0x450] sm:$0xff]
        %v450 = vld [vmem:[%s205 + $0x458] sm:$0xf]
        %v451 = vld [vmem:[%s205 + $0x45c] sm:$0xff]
        %v452 = vld [vmem:[%s205 + $0x464] sm:$0xf]
        %v453 = vld [vmem:[%s205 + $0x468] sm:$0xff]
        %v454 = vld [vmem:[%s205 + $0x470] sm:$0xf]
        %v455 = vld [vmem:[%s205 + $0x474] sm:$0xff]
        %v456 = vld [vmem:[%s205 + $0x47c] sm:$0xf]
        %v457 = vld [vmem:[%s205 + $0x480] sm:$0xff]
        %v458 = vld [vmem:[%s205 + $0x488] sm:$0xf]
        %v459 = vld [vmem:[%s205 + $0x48c] sm:$0xff]
        %v460 = vld [vmem:[%s205 + $0x494] sm:$0xf]
        %v461 = vld [vmem:[%s205 + $0x498] sm:$0xff]
        %v462 = vld [vmem:[%s205 + $0x4a0] sm:$0xf]
        %v463 = vld [vmem:[%s205 + $0x4a4] sm:$0xff]
        %v464 = vld [vmem:[%s205 + $0x4ac] sm:$0xf]
        %v465 = vld [vmem:[%s205 + $0x4b0] sm:$0xff]
        %v466 = vld [vmem:[%s205 + $0x4b8] sm:$0xf]
        %v467 = vld [vmem:[%s205 + $0x4bc] sm:$0xff]
        %v468 = vld [vmem:[%s205 + $0x4c4] sm:$0xf]
        %v469 = vld [vmem:[%s205 + $0x4c8] sm:$0xff]
        %v470 = vld [vmem:[%s205 + $0x4d0] sm:$0xf]
        %v471 = vld [vmem:[%s205 + $0x4d4] sm:$0xff]
        %v472 = vld [vmem:[%s205 + $0x4dc] sm:$0xf]
        %v473 = vld [vmem:[%s205 + $0x4e0] sm:$0xff]
        %v474 = vld [vmem:[%s205 + $0x4e8] sm:$0xf]
        %v475 = vld [vmem:[%s205 + $0x4ec] sm:$0xff]
        %v476 = vld [vmem:[%s205 + $0x4f4] sm:$0xf]
        %v477 = vld [vmem:[%s205 + $0x4f8] sm:$0xff]
        %v478 = vld [vmem:[%s205 + $0x500] sm:$0xf]
        %v479 = vld [vmem:[%s205 + $0x504] sm:$0xff]
        %v480 = vld [vmem:[%s205 + $0x50c] sm:$0xf]
        %v481 = vld [vmem:[%s205 + $0x510] sm:$0xff]
        %v482 = vld [vmem:[%s205 + $0x518] sm:$0xf]
        %v483 = vld [vmem:[%s205 + $0x51c] sm:$0xff]
        %v484 = vld [vmem:[%s205 + $0x524] sm:$0xf]
        %v485 = vld [vmem:[%s205 + $0x528] sm:$0xff]
        %v486 = vld [vmem:[%s205 + $0x530] sm:$0xf]
        %v487 = vld [vmem:[%s205 + $0x534] sm:$0xff]
        %v488 = vld [vmem:[%s205 + $0x53c] sm:$0xf]
        %v489 = vld [vmem:[%s205 + $0x540] sm:$0xff]
        %v490 = vld [vmem:[%s205 + $0x548] sm:$0xf]
        %v491 = vld [vmem:[%s205 + $0x54c] sm:$0xff]
        %v492 = vld [vmem:[%s205 + $0x554] sm:$0xf]
        %v493 = vld [vmem:[%s205 + $0x558] sm:$0xff]
        %v494 = vld [vmem:[%s205 + $0x560] sm:$0xf]
        %v495 = vld [vmem:[%s205 + $0x564] sm:$0xff]
        %v496 = vld [vmem:[%s205 + $0x56c] sm:$0xf]
        %v497 = vld [vmem:[%s205 + $0x570] sm:$0xff]
        %v498 = vld [vmem:[%s205 + $0x578] sm:$0xf]
        %v499 = vld [vmem:[%s205 + $0x57c] sm:$0xff]
        %v500 = vld [vmem:[%s205 + $0x584] sm:$0xf]
        %v501 = vld [vmem:[%s205 + $0x588] sm:$0xff]
        %v502 = vld [vmem:[%s205 + $0x590] sm:$0xf]
        %v503 = vld [vmem:[%s205 + $0x594] sm:$0xff]
        %v504 = vld [vmem:[%s205 + $0x59c] sm:$0xf]
        %v505 = vld [vmem:[%s205 + $0x5a0] sm:$0xff]
        %v506 = vld [vmem:[%s205 + $0x5a8] sm:$0xf]
        %v507 = vld [vmem:[%s205 + $0x5ac] sm:$0xff]
        %v508 = vld [vmem:[%s205 + $0x5b4] sm:$0xf]
        %v509 = vld [vmem:[%s205 + $0x5b8] sm:$0xff]
        %v510 = vld [vmem:[%s205 + $0x5c0] sm:$0xf]
        %v511 = vld [vmem:[%s205 + $0x5c4] sm:$0xff]
        %v512 = vld [vmem:[%s205 + $0x5cc] sm:$0xf]
        %v513 = vld [vmem:[%s205 + $0x5d0] sm:$0xff]
        %v514 = vld [vmem:[%s205 + $0x5d8] sm:$0xf]
        %v515 = vld [vmem:[%s205 + $0x5dc] sm:$0xff]
        %v516 = vld [vmem:[%s205 + $0x5e4] sm:$0xf]
        %v517 = vld [vmem:[%s205 + $0x5e8] sm:$0xff]
        %v518 = vld [vmem:[%s205 + $0x5f0] sm:$0xf]
        %v519 = vld [vmem:[%s205 + $0x5f4] sm:$0xff]
        %v520 = vld [vmem:[%s205 + $0x5fc] sm:$0xf]
        %v521 = vld [vmem:[%s205 + $0x600] sm:$0xff]
        %v522 = vld [vmem:[%s205 + $0x608] sm:$0xf]
        %v523 = vld [vmem:[%s205 + $0x60c] sm:$0xff]
        %v524 = vld [vmem:[%s205 + $0x614] sm:$0xf]
        %v525 = vld [vmem:[%s205 + $0x618] sm:$0xff]
        %v526 = vld [vmem:[%s205 + $0x620] sm:$0xf]
        %v527 = vld [vmem:[%s205 + $0x624] sm:$0xff]
        %v528 = vld [vmem:[%s205 + $0x62c] sm:$0xf]
        %v529 = vld [vmem:[%s205 + $0x630] sm:$0xff]
        %v530 = vld [vmem:[%s205 + $0x638] sm:$0xf]
        %v531 = vld [vmem:[%s205 + $0x63c] sm:$0xff]
        %v532 = vld [vmem:[%s205 + $0x644] sm:$0xf]
        %v533 = vld [vmem:[%s205 + $0x648] sm:$0xff]
        %v534 = vld [vmem:[%s205 + $0x650] sm:$0xf]
        %v535 = vld [vmem:[%s205 + $0x654] sm:$0xff]
        %v536 = vld [vmem:[%s205 + $0x65c] sm:$0xf]
        %v537 = vld [vmem:[%s205 + $0x660] sm:$0xff]
        %v538 = vld [vmem:[%s205 + $0x668] sm:$0xf]
        %v539 = vld [vmem:[%s205 + $0x66c] sm:$0xff]
        %v540 = vld [vmem:[%s205 + $0x674] sm:$0xf]
        %v541 = vld [vmem:[%s205 + $0x678] sm:$0xff]
        %v542 = vld [vmem:[%s205 + $0x680] sm:$0xf]
        %v543 = vld [vmem:[%s205 + $0x684] sm:$0xff]
        %v544 = vld [vmem:[%s205 + $0x68c] sm:$0xf]
        %v545 = vld [vmem:[%s205 + $0x690] sm:$0xff]
        %v546 = vld [vmem:[%s205 + $0x698] sm:$0xf]
        %v547 = vld [vmem:[%s205 + $0x69c] sm:$0xff]
        %v548 = vld [vmem:[%s205 + $0x6a4] sm:$0xf]
        %v549 = vld [vmem:[%s205 + $0x6a8] sm:$0xff]
        %v550 = vld [vmem:[%s205 + $0x6b0] sm:$0xf]
        %v551 = vld [vmem:[%s205 + $0x6b4] sm:$0xff]
        %v552 = vld [vmem:[%s205 + $0x6bc] sm:$0xf]
        %v553 = vld [vmem:[%s205 + $0x6c0] sm:$0xff]
        %v554 = vld [vmem:[%s205 + $0x6c8] sm:$0xf]
        %v555 = vld [vmem:[%s205 + $0x6cc] sm:$0xff]
        %v556 = vld [vmem:[%s205 + $0x6d4] sm:$0xf]
        %v557 = vld [vmem:[%s205 + $0x6d8] sm:$0xff]
        %v558 = vld [vmem:[%s205 + $0x6e0] sm:$0xf]
        %v559 = vld [vmem:[%s205 + $0x6e4] sm:$0xff]
        %v560 = vld [vmem:[%s205 + $0x6ec] sm:$0xf]
        %v561 = vld [vmem:[%s205 + $0x6f0] sm:$0xff]
        %v562 = vld [vmem:[%s205 + $0x6f8] sm:$0xf]
        %v563 = vld [vmem:[%s205 + $0x6fc] sm:$0xff]
        %v564 = vld [vmem:[%s205 + $0x704] sm:$0xf]
        %v565 = vld [vmem:[%s205 + $0x708] sm:$0xff]
        %v566 = vld [vmem:[%s205 + $0x710] sm:$0xf]
        %v567 = vld [vmem:[%s205 + $0x714] sm:$0xff]
        %v568 = vld [vmem:[%s205 + $0x71c] sm:$0xf]
        %v569 = vld [vmem:[%s205 + $0x720] sm:$0xff]
        %v570 = vld [vmem:[%s205 + $0x728] sm:$0xf]
        %v571 = vld [vmem:[%s205 + $0x72c] sm:$0xff]
        %v572 = vld [vmem:[%s205 + $0x734] sm:$0xf]
        %v573 = vld [vmem:[%s205 + $0x738] sm:$0xff]
        %v574 = vld [vmem:[%s205 + $0x740] sm:$0xf]
        %v575 = vld [vmem:[%s205 + $0x744] sm:$0xff]
        %v576 = vld [vmem:[%s205 + $0x74c] sm:$0xf]
        %v577 = vld [vmem:[%s205 + $0x750] sm:$0xff]
        %v578 = vld [vmem:[%s205 + $0x758] sm:$0xf]
        %v579 = vld [vmem:[%s205 + $0x75c] sm:$0xff]
        %v580 = vld [vmem:[%s205 + $0x764] sm:$0xf]
        %v581 = vld [vmem:[%s205 + $0x768] sm:$0xff]
        %v582 = vld [vmem:[%s205 + $0x770] sm:$0xf]
        %v583 = vld [vmem:[%s205 + $0x774] sm:$0xff]
        %v584 = vld [vmem:[%s205 + $0x77c] sm:$0xf]
        %v585 = vld [vmem:[%s205 + $0x780] sm:$0xff]
        %v586 = vld [vmem:[%s205 + $0x788] sm:$0xf]
        %v587 = vld [vmem:[%s205 + $0x78c] sm:$0xff]
        %v588 = vld [vmem:[%s205 + $0x794] sm:$0xf]
        %v589 = vld [vmem:[%s205 + $0x798] sm:$0xff]
        %v590 = vld [vmem:[%s205 + $0x7a0] sm:$0xf]
        %v591 = vld [vmem:[%s205 + $0x7a4] sm:$0xff]
        %v592 = vld [vmem:[%s205 + $0x7ac] sm:$0xf]
        %v593 = vld [vmem:[%s205 + $0x7b0] sm:$0xff]
        %v594 = vld [vmem:[%s205 + $0x7b8] sm:$0xf]
        %v595 = vld [vmem:[%s205 + $0x7bc] sm:$0xff]
        %v596 = vld [vmem:[%s205 + $0x7c4] sm:$0xf]
        %v597 = vld [vmem:[%s205 + $0x7c8] sm:$0xff]
        %v598 = vld [vmem:[%s205 + $0x7d0] sm:$0xf]
        %v599 = vld [vmem:[%s205 + $0x7d4] sm:$0xff]
        %v600 = vld [vmem:[%s205 + $0x7dc] sm:$0xf]
        %v601 = vld [vmem:[%s205 + $0x7e0] sm:$0xff]
        %v602 = vld [vmem:[%s205 + $0x7e8] sm:$0xf]
        %v603 = vld [vmem:[%s205 + $0x7ec] sm:$0xff]
        %v604 = vld [vmem:[%s205 + $0x7f4] sm:$0xf]
        %v605 = vld [vmem:[%s205 + $0x7f8] sm:$0xff]
        %v606 = vld [vmem:[%s205 + $0x800] sm:$0xf]
        %v607 = vld [vmem:[%s205 + $0x804] sm:$0xff]
        %v608 = vld [vmem:[%s205 + $0x80c] sm:$0xf]
        %v609 = vld [vmem:[%s205 + $0x810] sm:$0xff]
        %v610 = vld [vmem:[%s205 + $0x818] sm:$0xf]
        %v611 = vld [vmem:[%s205 + $0x81c] sm:$0xff]
        %v612 = vld [vmem:[%s205 + $0x824] sm:$0xf]
        %v613 = vld [vmem:[%s205 + $0x828] sm:$0xff]
        %v614 = vld [vmem:[%s205 + $0x830] sm:$0xf]
        %v615 = vld [vmem:[%s205 + $0x834] sm:$0xff]
        %v616 = vld [vmem:[%s205 + $0x83c] sm:$0xf]
        %v617 = vld [vmem:[%s205 + $0x840] sm:$0xff]
        %v618 = vld [vmem:[%s205 + $0x848] sm:$0xf]
        %v619 = vld [vmem:[%s205 + $0x84c] sm:$0xff]
        %v620 = vld [vmem:[%s205 + $0x854] sm:$0xf]
        %v621 = vld [vmem:[%s205 + $0x858] sm:$0xff]
        %v622 = vld [vmem:[%s205 + $0x860] sm:$0xf]
        %v623 = vld [vmem:[%s205 + $0x864] sm:$0xff]
        %v624 = vld [vmem:[%s205 + $0x86c] sm:$0xf]
        %v625 = vld [vmem:[%s205 + $0x870] sm:$0xff]
        %v626 = vld [vmem:[%s205 + $0x878] sm:$0xf]
        %v627 = vld [vmem:[%s205 + $0x87c] sm:$0xff]
        %v628 = vld [vmem:[%s205 + $0x884] sm:$0xf]
        %v629 = vld [vmem:[%s205 + $0x888] sm:$0xff]
        %v630 = vld [vmem:[%s205 + $0x890] sm:$0xf]
        %v631 = vld [vmem:[%s205 + $0x894] sm:$0xff]
        %v632 = vld [vmem:[%s205 + $0x89c] sm:$0xf]
        %v633 = vld [vmem:[%s205 + $0x8a0] sm:$0xff]
        %v634 = vld [vmem:[%s205 + $0x8a8] sm:$0xf]
        %v635 = vld [vmem:[%s205 + $0x8ac] sm:$0xff]
        %v636 = vld [vmem:[%s205 + $0x8b4] sm:$0xf]
        %v637 = vld [vmem:[%s205 + $0x8b8] sm:$0xff]
        %v638 = vld [vmem:[%s205 + $0x8c0] sm:$0xf]
        %v639 = vld [vmem:[%s205 + $0x8c4] sm:$0xff]
        %v640 = vld [vmem:[%s205 + $0x8cc] sm:$0xf]
        %v641 = vld [vmem:[%s205 + $0x8d0] sm:$0xff]
        %v642 = vld [vmem:[%s205 + $0x8d8] sm:$0xf]
        %v643 = vld [vmem:[%s205 + $0x8dc] sm:$0xff]
        %v644 = vld [vmem:[%s205 + $0x8e4] sm:$0xf]
        %v645 = vld [vmem:[%s205 + $0x8e8] sm:$0xff]
        %v646 = vld [vmem:[%s205 + $0x8f0] sm:$0xf]
        %v647 = vld [vmem:[%s205 + $0x8f4] sm:$0xff]
        %v648 = vld [vmem:[%s205 + $0x8fc] sm:$0xf]
        %v649 = vld [vmem:[%s205 + $0x900] sm:$0xff]
        %v650 = vld [vmem:[%s205 + $0x908] sm:$0xf]
        %v651 = vld [vmem:[%s205 + $0x90c] sm:$0xff]
        %v652 = vld [vmem:[%s205 + $0x914] sm:$0xf]
        %v653 = vld [vmem:[%s205 + $0x918] sm:$0xff]
        %v654 = vld [vmem:[%s205 + $0x920] sm:$0xf]
        %v655 = vld [vmem:[%s205 + $0x924] sm:$0xff]
        %v656 = vld [vmem:[%s205 + $0x92c] sm:$0xf]
        %v657 = vld [vmem:[%s205 + $0x930] sm:$0xff]
        %v658 = vld [vmem:[%s205 + $0x938] sm:$0xf]
        %v659 = vld [vmem:[%s205 + $0x93c] sm:$0xff]
        %v660 = vld [vmem:[%s205 + $0x944] sm:$0xf]
        %v661 = vld [vmem:[%s205 + $0x948] sm:$0xff]
        %v662 = vld [vmem:[%s205 + $0x950] sm:$0xf]
        %v663 = vld [vmem:[%s205 + $0x954] sm:$0xff]
        %v664 = vld [vmem:[%s205 + $0x95c] sm:$0xf]
        %v665 = vld [vmem:[%s205 + $0x960] sm:$0xff]
        %v666 = vld [vmem:[%s205 + $0x968] sm:$0xf]
        %v667 = vld [vmem:[%s205 + $0x96c] sm:$0xff]
        %v668 = vld [vmem:[%s205 + $0x974] sm:$0xf]
        %v669 = vld [vmem:[%s205 + $0x978] sm:$0xff]
        %v670 = vld [vmem:[%s205 + $0x980] sm:$0xf]
        %v671 = vld [vmem:[%s205 + $0x984] sm:$0xff]
        %v672 = vld [vmem:[%s205 + $0x98c] sm:$0xf]
        %v673 = vld [vmem:[%s205 + $0x990] sm:$0xff]
        %v674 = vld [vmem:[%s205 + $0x998] sm:$0xf]
        %v675 = vld [vmem:[%s205 + $0x99c] sm:$0xff]
        %v676 = vld [vmem:[%s205 + $0x9a4] sm:$0xf]
        %v677 = vld [vmem:[%s205 + $0x9a8] sm:$0xff]
        %v678 = vld [vmem:[%s205 + $0x9b0] sm:$0xf]
        %v679 = vld [vmem:[%s205 + $0x9b4] sm:$0xff]
        %v680 = vld [vmem:[%s205 + $0x9bc] sm:$0xf]
        %v681 = vld [vmem:[%s205 + $0x9c0] sm:$0xff]
        %v682 = vld [vmem:[%s205 + $0x9c8] sm:$0xf]
        %v683 = vld [vmem:[%s205 + $0x9cc] sm:$0xff]
        %v684 = vld [vmem:[%s205 + $0x9d4] sm:$0xf]
        %v685 = vld [vmem:[%s205 + $0x9d8] sm:$0xff]
        %v686 = vld [vmem:[%s205 + $0x9e0] sm:$0xf]
        %v687 = vld [vmem:[%s205 + $0x9e4] sm:$0xff]
        %v688 = vld [vmem:[%s205 + $0x9ec] sm:$0xf]
        %v689 = vld [vmem:[%s205 + $0x9f0] sm:$0xff]
        %v690 = vld [vmem:[%s205 + $0x9f8] sm:$0xf]
        %v691 = vld [vmem:[%s205 + $0x9fc] sm:$0xff]
        %v692 = vld [vmem:[%s205 + $0xa04] sm:$0xf]
        %v693 = vld [vmem:[%s205 + $0xa08] sm:$0xff]
        %v694 = vld [vmem:[%s205 + $0xa10] sm:$0xf]
        %v695 = vld [vmem:[%s205 + $0xa14] sm:$0xff]
        %v696 = vld [vmem:[%s205 + $0xa1c] sm:$0xf]
        %v697 = vld [vmem:[%s205 + $0xa20] sm:$0xff]
        %v698 = vld [vmem:[%s205 + $0xa28] sm:$0xf]
        %v699 = vld [vmem:[%s205 + $0xa2c] sm:$0xff]
        %v700 = vld [vmem:[%s205 + $0xa34] sm:$0xf]
        %v701 = vld [vmem:[%s205 + $0xa38] sm:$0xff]
        %v702 = vld [vmem:[%s205 + $0xa40] sm:$0xf]
        %v703 = vld [vmem:[%s205 + $0xa44] sm:$0xff]
        %v704 = vld [vmem:[%s205 + $0xa4c] sm:$0xf]
        %v705 = vld [vmem:[%s205 + $0xa50] sm:$0xff]
        %v706 = vld [vmem:[%s205 + $0xa58] sm:$0xf]
        %v707 = vld [vmem:[%s205 + $0xa5c] sm:$0xff]
        %v708 = vld [vmem:[%s205 + $0xa64] sm:$0xf]
        %v709 = vld [vmem:[%s205 + $0xa68] sm:$0xff]
        %v710 = vld [vmem:[%s205 + $0xa70] sm:$0xf]
        %v711 = vld [vmem:[%s205 + $0xa74] sm:$0xff]
        %v712 = vld [vmem:[%s205 + $0xa7c] sm:$0xf]
        %v713 = vld [vmem:[%s205 + $0xa80] sm:$0xff]
        %v714 = vld [vmem:[%s205 + $0xa88] sm:$0xf]
        %v715 = vld [vmem:[%s205 + $0xa8c] sm:$0xff]
        %v716 = vld [vmem:[%s205 + $0xa94] sm:$0xf]
        %v717 = vld [vmem:[%s205 + $0xa98] sm:$0xff]
        %v718 = vld [vmem:[%s205 + $0xaa0] sm:$0xf]
        %v719 = vld [vmem:[%s205 + $0xaa4] sm:$0xff]
        %v720 = vld [vmem:[%s205 + $0xaac] sm:$0xf]
        %v721 = vld [vmem:[%s205 + $0xab0] sm:$0xff]
        %v722 = vld [vmem:[%s205 + $0xab8] sm:$0xf]
        %v723 = vld [vmem:[%s205 + $0xabc] sm:$0xff]
        %v724 = vld [vmem:[%s205 + $0xac4] sm:$0xf]
        %v725 = vld [vmem:[%s205 + $0xac8] sm:$0xff]
        %v726 = vld [vmem:[%s205 + $0xad0] sm:$0xf]
        %v727 = vld [vmem:[%s205 + $0xad4] sm:$0xff]
        %v728 = vld [vmem:[%s205 + $0xadc] sm:$0xf]
        %v729 = vld [vmem:[%s205 + $0xae0] sm:$0xff]
        %v730 = vld [vmem:[%s205 + $0xae8] sm:$0xf]
        %v731 = vld [vmem:[%s205 + $0xaec] sm:$0xff]
        %v732 = vld [vmem:[%s205 + $0xaf4] sm:$0xf]
        %v733 = vld [vmem:[%s205 + $0xaf8] sm:$0xff]
        %v734 = vld [vmem:[%s205 + $0xb00] sm:$0xf]
        %v735 = vld [vmem:[%s205 + $0xb04] sm:$0xff]
        %v736 = vld [vmem:[%s205 + $0xb0c] sm:$0xf]
        %v737 = vld [vmem:[%s205 + $0xb10] sm:$0xff]
        %v738 = vld [vmem:[%s205 + $0xb18] sm:$0xf]
        %v739 = vld [vmem:[%s205 + $0xb1c] sm:$0xff]
        %v740 = vld [vmem:[%s205 + $0xb24] sm:$0xf]
        %v741 = vld [vmem:[%s205 + $0xb28] sm:$0xff]
        %v742 = vld [vmem:[%s205 + $0xb30] sm:$0xf]
        %v743 = vld [vmem:[%s205 + $0xb34] sm:$0xff]
        %v744 = vld [vmem:[%s205 + $0xb3c] sm:$0xf]
        %v745 = vld [vmem:[%s205 + $0xb40] sm:$0xff]
        %v746 = vld [vmem:[%s205 + $0xb48] sm:$0xf]
        %v747 = vld [vmem:[%s205 + $0xb4c] sm:$0xff]
        %v748 = vld [vmem:[%s205 + $0xb54] sm:$0xf]
        %v749 = vld [vmem:[%s205 + $0xb58] sm:$0xff]
        %v750 = vld [vmem:[%s205 + $0xb60] sm:$0xf]
        %v751 = vld [vmem:[%s205 + $0xb64] sm:$0xff]
        %v752 = vld [vmem:[%s205 + $0xb6c] sm:$0xf]
        %v753 = vld [vmem:[%s205 + $0xb70] sm:$0xff]
        %v754 = vld [vmem:[%s205 + $0xb78] sm:$0xf]
        %v755 = vld [vmem:[%s205 + $0xb7c] sm:$0xff]
        %v756 = vld [vmem:[%s205 + $0xb84] sm:$0xf]
        %v757 = vld [vmem:[%s205 + $0xb88] sm:$0xff]
        %v758 = vld [vmem:[%s205 + $0xb90] sm:$0xf]
        %v759 = vld [vmem:[%s205 + $0xb94] sm:$0xff]
        %v760 = vld [vmem:[%s205 + $0xb9c] sm:$0xf]
        %v761 = vld [vmem:[%s205 + $0xba0] sm:$0xff]
        %v762 = vld [vmem:[%s205 + $0xba8] sm:$0xf]
        %v763 = vld [vmem:[%s205 + $0xbac] sm:$0xff]
        %v764 = vld [vmem:[%s205 + $0xbb4] sm:$0xf]
        %v765 = vld [vmem:[%s205 + $0xbb8] sm:$0xff]
        %v766 = vld [vmem:[%s205 + $0xbc0] sm:$0xf]
        %v767 = vld [vmem:[%s205 + $0xbc4] sm:$0xff]
        %v768 = vld [vmem:[%s205 + $0xbcc] sm:$0xf]
        %v769 = vld [vmem:[%s205 + $0xbd0] sm:$0xff]
        %v770 = vld [vmem:[%s205 + $0xbd8] sm:$0xf]
        %v771 = vld [vmem:[%s205 + $0xbdc] sm:$0xff]
        %v772 = vld [vmem:[%s205 + $0xbe4] sm:$0xf]
        %v773 = vld [vmem:[%s205 + $0xbe8] sm:$0xff]
        %v774 = vld [vmem:[%s205 + $0xbf0] sm:$0xf]
        %v775 = vld [vmem:[%s205 + $0xbf4] sm:$0xff]
        %v776 = vld [vmem:[%s205 + $0xbfc] sm:$0xf]
        %v793 = vunpack.c.l.b16 %v249
        %v794 = vunpack.c.h.b16 %v249
        %v795 = vunpack.c.l.b16 %v250
        %v796 = vunpack.c.h.b16 %v250
        %v797 = vunpack.c.l.b16 %v251
        %v798 = vunpack.c.h.b16 %v251
        %v799 = vunpack.c.l.b16 %v252
        %v800 = vunpack.c.h.b16 %v252
        %v801 = vunpack.c.l.b16 %v253
        %v802 = vunpack.c.h.b16 %v253
        %v803 = vunpack.c.l.b16 %v254
        %v804 = vunpack.c.h.b16 %v254
        %v805 = vunpack.c.l.b16 %v255
        %v806 = vunpack.c.h.b16 %v255
        %v807 = vunpack.c.l.b16 %v256
        %v808 = vunpack.c.h.b16 %v256
        %v809 = vunpack.c.l.b16 %v257
        %v810 = vunpack.c.h.b16 %v257
        %v811 = vunpack.c.l.b16 %v258
        %v812 = vunpack.c.h.b16 %v258
        %v813 = vunpack.c.l.b16 %v259
        %v814 = vunpack.c.h.b16 %v259
        %v815 = vunpack.c.l.b16 %v260
        %v816 = vunpack.c.h.b16 %v260
        %v817 = vunpack.c.l.b16 %v261
        %v818 = vunpack.c.h.b16 %v261
        %v819 = vunpack.c.l.b16 %v262
        %v820 = vunpack.c.h.b16 %v262
        %v821 = vunpack.c.l.b16 %v263
        %v822 = vunpack.c.h.b16 %v263
        %v823 = vunpack.c.l.b16 %v264
        %v824 = vunpack.c.h.b16 %v264
        %v825 = vpack.c.b16 %v809, %v793
        %v826 = vpack.c.b16 %v810, %v794
        %v827 = vpack.c.b16 %v811, %v795
        %v828 = vpack.c.b16 %v812, %v796
        %v829 = vpack.c.b16 %v813, %v797
        %v830 = vpack.c.b16 %v814, %v798
        %v831 = vpack.c.b16 %v815, %v799
        %v832 = vpack.c.b16 %v816, %v800
        %v833 = vpack.c.b16 %v817, %v801
        %v834 = vpack.c.b16 %v818, %v802
        %v835 = vpack.c.b16 %v819, %v803
        %v836 = vpack.c.b16 %v820, %v804
        %v837 = vpack.c.b16 %v821, %v805
        %v838 = vpack.c.b16 %v822, %v806
        %v839 = vpack.c.b16 %v823, %v807
        %v840 = vpack.c.b16 %v824, %v808
        %v1369 = vunpack.c.l.b16 %v265
        %v1370 = vunpack.c.h.b16 %v265
        %v1371 = vunpack.c.l.b16 %v266
        %v1372 = vunpack.c.l.b16 %v267
        %v1373 = vunpack.c.h.b16 %v267
        %v1374 = vunpack.c.l.b16 %v268
        %v1375 = vunpack.c.l.b16 %v269
        %v1376 = vunpack.c.h.b16 %v269
        %v1377 = vunpack.c.l.b16 %v270
        %v1378 = vunpack.c.l.b16 %v271
        %v1379 = vunpack.c.h.b16 %v271
        %v1380 = vunpack.c.l.b16 %v272
        %v1381 = vunpack.c.l.b16 %v273
        %v1382 = vunpack.c.h.b16 %v273
        %v1383 = vunpack.c.l.b16 %v274
        %v1384 = vunpack.c.l.b16 %v275
        %v1385 = vunpack.c.h.b16 %v275
        %v1386 = vunpack.c.l.b16 %v276
        %v1387 = vunpack.c.l.b16 %v277
        %v1388 = vunpack.c.h.b16 %v277
        %v1389 = vunpack.c.l.b16 %v278
        %v1390 = vunpack.c.l.b16 %v279
        %v1391 = vunpack.c.h.b16 %v279
        %v1392 = vunpack.c.l.b16 %v280
        %v1393 = vunpack.c.l.b16 %v281
        %v1394 = vunpack.c.h.b16 %v281
        %v1395 = vunpack.c.l.b16 %v282
        %v1396 = vunpack.c.l.b16 %v283
        %v1397 = vunpack.c.h.b16 %v283
        %v1398 = vunpack.c.l.b16 %v284
        %v1399 = vunpack.c.l.b16 %v285
        %v1400 = vunpack.c.h.b16 %v285
        %v1401 = vunpack.c.l.b16 %v286
        %v1402 = vunpack.c.l.b16 %v287
        %v1403 = vunpack.c.h.b16 %v287
        %v1404 = vunpack.c.l.b16 %v288
        %v1405 = vunpack.c.l.b16 %v289
        %v1406 = vunpack.c.h.b16 %v289
        %v1407 = vunpack.c.l.b16 %v290
        %v1408 = vunpack.c.l.b16 %v291
        %v1409 = vunpack.c.h.b16 %v291
        %v1410 = vunpack.c.l.b16 %v292
        %v1411 = vunpack.c.l.b16 %v293
        %v1412 = vunpack.c.h.b16 %v293
        %v1413 = vunpack.c.l.b16 %v294
        %v1414 = vunpack.c.l.b16 %v295
        %v1415 = vunpack.c.h.b16 %v295
        %v1416 = vunpack.c.l.b16 %v296
        %v1417 = vunpack.c.l.b16 %v297
        %v1418 = vunpack.c.h.b16 %v297
        %v1419 = vunpack.c.l.b16 %v298
        %v1420 = vunpack.c.l.b16 %v299
        %v1421 = vunpack.c.h.b16 %v299
        %v1422 = vunpack.c.l.b16 %v300
        %v1423 = vunpack.c.l.b16 %v301
        %v1424 = vunpack.c.h.b16 %v301
        %v1425 = vunpack.c.l.b16 %v302
        %v1426 = vunpack.c.l.b16 %v303
        %v1427 = vunpack.c.h.b16 %v303
        %v1428 = vunpack.c.l.b16 %v304
        %v1429 = vunpack.c.l.b16 %v305
        %v1430 = vunpack.c.h.b16 %v305
        %v1431 = vunpack.c.l.b16 %v306
        %v1432 = vunpack.c.l.b16 %v307
        %v1433 = vunpack.c.h.b16 %v307
        %v1434 = vunpack.c.l.b16 %v308
        %v1435 = vunpack.c.l.b16 %v309
        %v1436 = vunpack.c.h.b16 %v309
        %v1437 = vunpack.c.l.b16 %v310
        %v1438 = vunpack.c.l.b16 %v311
        %v1439 = vunpack.c.h.b16 %v311
        %v1440 = vunpack.c.l.b16 %v312
        %v1441 = vunpack.c.l.b16 %v313
        %v1442 = vunpack.c.h.b16 %v313
        %v1443 = vunpack.c.l.b16 %v314
        %v1444 = vunpack.c.l.b16 %v315
        %v1445 = vunpack.c.h.b16 %v315
        %v1446 = vunpack.c.l.b16 %v316
        %v1447 = vunpack.c.l.b16 %v317
        %v1448 = vunpack.c.h.b16 %v317
        %v1449 = vunpack.c.l.b16 %v318
        %v1450 = vunpack.c.l.b16 %v319
        %v1451 = vunpack.c.h.b16 %v319
        %v1452 = vunpack.c.l.b16 %v320
        %v1453 = vunpack.c.l.b16 %v321
        %v1454 = vunpack.c.h.b16 %v321
        %v1455 = vunpack.c.l.b16 %v322
        %v1456 = vunpack.c.l.b16 %v323
        %v1457 = vunpack.c.h.b16 %v323
        %v1458 = vunpack.c.l.b16 %v324
        %v1459 = vunpack.c.l.b16 %v325
        %v1460 = vunpack.c.h.b16 %v325
        %v1461 = vunpack.c.l.b16 %v326
        %v1462 = vunpack.c.l.b16 %v327
        %v1463 = vunpack.c.h.b16 %v327
        %v1464 = vunpack.c.l.b16 %v328
        %v1465 = vunpack.c.l.b16 %v329
        %v1466 = vunpack.c.h.b16 %v329
        %v1467 = vunpack.c.l.b16 %v330
        %v1468 = vunpack.c.l.b16 %v331
        %v1469 = vunpack.c.h.b16 %v331
        %v1470 = vunpack.c.l.b16 %v332
        %v1471 = vunpack.c.l.b16 %v333
        %v1472 = vunpack.c.h.b16 %v333
        %v1473 = vunpack.c.l.b16 %v334
        %v1474 = vunpack.c.l.b16 %v335
        %v1475 = vunpack.c.h.b16 %v335
        %v1476 = vunpack.c.l.b16 %v336
        %v1477 = vunpack.c.l.b16 %v337
        %v1478 = vunpack.c.h.b16 %v337
        %v1479 = vunpack.c.l.b16 %v338
        %v1480 = vunpack.c.l.b16 %v339
        %v1481 = vunpack.c.h.b16 %v339
        %v1482 = vunpack.c.l.b16 %v340
        %v1483 = vunpack.c.l.b16 %v341
        %v1484 = vunpack.c.h.b16 %v341
        %v1485 = vunpack.c.l.b16 %v342
        %v1486 = vunpack.c.l.b16 %v343
        %v1487 = vunpack.c.h.b16 %v343
        %v1488 = vunpack.c.l.b16 %v344
        %v1489 = vunpack.c.l.b16 %v345
        %v1490 = vunpack.c.h.b16 %v345
        %v1491 = vunpack.c.l.b16 %v346
        %v1492 = vunpack.c.l.b16 %v347
        %v1493 = vunpack.c.h.b16 %v347
        %v1494 = vunpack.c.l.b16 %v348
        %v1495 = vunpack.c.l.b16 %v349
        %v1496 = vunpack.c.h.b16 %v349
        %v1497 = vunpack.c.l.b16 %v350
        %v1498 = vunpack.c.l.b16 %v351
        %v1499 = vunpack.c.h.b16 %v351
        %v1500 = vunpack.c.l.b16 %v352
        %v1501 = vunpack.c.l.b16 %v353
        %v1502 = vunpack.c.h.b16 %v353
        %v1503 = vunpack.c.l.b16 %v354
        %v1504 = vunpack.c.l.b16 %v355
        %v1505 = vunpack.c.h.b16 %v355
        %v1506 = vunpack.c.l.b16 %v356
        %v1507 = vunpack.c.l.b16 %v357
        %v1508 = vunpack.c.h.b16 %v357
        %v1509 = vunpack.c.l.b16 %v358
        %v1510 = vunpack.c.l.b16 %v359
        %v1511 = vunpack.c.h.b16 %v359
        %v1512 = vunpack.c.l.b16 %v360
        %v1513 = vunpack.c.l.b16 %v361
        %v1514 = vunpack.c.h.b16 %v361
        %v1515 = vunpack.c.l.b16 %v362
        %v1516 = vunpack.c.l.b16 %v363
        %v1517 = vunpack.c.h.b16 %v363
        %v1518 = vunpack.c.l.b16 %v364
        %v1519 = vunpack.c.l.b16 %v365
        %v1520 = vunpack.c.h.b16 %v365
        %v1521 = vunpack.c.l.b16 %v366
        %v1522 = vunpack.c.l.b16 %v367
        %v1523 = vunpack.c.h.b16 %v367
        %v1524 = vunpack.c.l.b16 %v368
        %v1525 = vunpack.c.l.b16 %v369
        %v1526 = vunpack.c.h.b16 %v369
        %v1527 = vunpack.c.l.b16 %v370
        %v1528 = vunpack.c.l.b16 %v371
        %v1529 = vunpack.c.h.b16 %v371
        %v1530 = vunpack.c.l.b16 %v372
        %v1531 = vunpack.c.l.b16 %v373
        %v1532 = vunpack.c.h.b16 %v373
        %v1533 = vunpack.c.l.b16 %v374
        %v1534 = vunpack.c.l.b16 %v375
        %v1535 = vunpack.c.h.b16 %v375
        %v1536 = vunpack.c.l.b16 %v376
        %v1537 = vunpack.c.l.b16 %v377
        %v1538 = vunpack.c.h.b16 %v377
        %v1539 = vunpack.c.l.b16 %v378
        %v1540 = vunpack.c.l.b16 %v379
        %v1541 = vunpack.c.h.b16 %v379
        %v1542 = vunpack.c.l.b16 %v380
        %v1543 = vunpack.c.l.b16 %v381
        %v1544 = vunpack.c.h.b16 %v381
        %v1545 = vunpack.c.l.b16 %v382
        %v1546 = vunpack.c.l.b16 %v383
        %v1547 = vunpack.c.h.b16 %v383
        %v1548 = vunpack.c.l.b16 %v384
        %v1549 = vunpack.c.l.b16 %v385
        %v1550 = vunpack.c.h.b16 %v385
        %v1551 = vunpack.c.l.b16 %v386
        %v1552 = vunpack.c.l.b16 %v387
        %v1553 = vunpack.c.h.b16 %v387
        %v1554 = vunpack.c.l.b16 %v388
        %v1555 = vunpack.c.l.b16 %v389
        %v1556 = vunpack.c.h.b16 %v389
        %v1557 = vunpack.c.l.b16 %v390
        %v1558 = vunpack.c.l.b16 %v391
        %v1559 = vunpack.c.h.b16 %v391
        %v1560 = vunpack.c.l.b16 %v392
        %v1561 = vunpack.c.l.b16 %v393
        %v1562 = vunpack.c.h.b16 %v393
        %v1563 = vunpack.c.l.b16 %v394
        %v1564 = vunpack.c.l.b16 %v395
        %v1565 = vunpack.c.h.b16 %v395
        %v1566 = vunpack.c.l.b16 %v396
        %v1567 = vunpack.c.l.b16 %v397
        %v1568 = vunpack.c.h.b16 %v397
        %v1569 = vunpack.c.l.b16 %v398
        %v1570 = vunpack.c.l.b16 %v399
        %v1571 = vunpack.c.h.b16 %v399
        %v1572 = vunpack.c.l.b16 %v400
        %v1573 = vunpack.c.l.b16 %v401
        %v1574 = vunpack.c.h.b16 %v401
        %v1575 = vunpack.c.l.b16 %v402
        %v1576 = vunpack.c.l.b16 %v403
        %v1577 = vunpack.c.h.b16 %v403
        %v1578 = vunpack.c.l.b16 %v404
        %v1579 = vunpack.c.l.b16 %v405
        %v1580 = vunpack.c.h.b16 %v405
        %v1581 = vunpack.c.l.b16 %v406
        %v1582 = vunpack.c.l.b16 %v407
        %v1583 = vunpack.c.h.b16 %v407
        %v1584 = vunpack.c.l.b16 %v408
        %v1585 = vunpack.c.l.b16 %v409
        %v1586 = vunpack.c.h.b16 %v409
        %v1587 = vunpack.c.l.b16 %v410
        %v1588 = vunpack.c.l.b16 %v411
        %v1589 = vunpack.c.h.b16 %v411
        %v1590 = vunpack.c.l.b16 %v412
        %v1591 = vunpack.c.l.b16 %v413
        %v1592 = vunpack.c.h.b16 %v413
        %v1593 = vunpack.c.l.b16 %v414
        %v1594 = vunpack.c.l.b16 %v415
        %v1595 = vunpack.c.h.b16 %v415
        %v1596 = vunpack.c.l.b16 %v416
        %v1597 = vunpack.c.l.b16 %v417
        %v1598 = vunpack.c.h.b16 %v417
        %v1599 = vunpack.c.l.b16 %v418
        %v1600 = vunpack.c.l.b16 %v419
        %v1601 = vunpack.c.h.b16 %v419
        %v1602 = vunpack.c.l.b16 %v420
        %v1603 = vunpack.c.l.b16 %v421
        %v1604 = vunpack.c.h.b16 %v421
        %v1605 = vunpack.c.l.b16 %v422
        %v1606 = vunpack.c.l.b16 %v423
        %v1607 = vunpack.c.h.b16 %v423
        %v1608 = vunpack.c.l.b16 %v424
        %v1609 = vunpack.c.l.b16 %v425
        %v1610 = vunpack.c.h.b16 %v425
        %v1611 = vunpack.c.l.b16 %v426
        %v1612 = vunpack.c.l.b16 %v427
        %v1613 = vunpack.c.h.b16 %v427
        %v1614 = vunpack.c.l.b16 %v428
        %v1615 = vunpack.c.l.b16 %v429
        %v1616 = vunpack.c.h.b16 %v429
        %v1617 = vunpack.c.l.b16 %v430
        %v1618 = vunpack.c.l.b16 %v431
        %v1619 = vunpack.c.h.b16 %v431
        %v1620 = vunpack.c.l.b16 %v432
        %v1621 = vunpack.c.l.b16 %v433
        %v1622 = vunpack.c.h.b16 %v433
        %v1623 = vunpack.c.l.b16 %v434
        %v1624 = vunpack.c.l.b16 %v435
        %v1625 = vunpack.c.h.b16 %v435
        %v1626 = vunpack.c.l.b16 %v436
        %v1627 = vunpack.c.l.b16 %v437
        %v1628 = vunpack.c.h.b16 %v437
        %v1629 = vunpack.c.l.b16 %v438
        %v1630 = vunpack.c.l.b16 %v439
        %v1631 = vunpack.c.h.b16 %v439
        %v1632 = vunpack.c.l.b16 %v440
        %v1633 = vunpack.c.l.b16 %v441
        %v1634 = vunpack.c.h.b16 %v441
        %v1635 = vunpack.c.l.b16 %v442
        %v1636 = vunpack.c.l.b16 %v443
        %v1637 = vunpack.c.h.b16 %v443
        %v1638 = vunpack.c.l.b16 %v444
        %v1639 = vunpack.c.l.b16 %v445
        %v1640 = vunpack.c.h.b16 %v445
        %v1641 = vunpack.c.l.b16 %v446
        %v1642 = vunpack.c.l.b16 %v447
        %v1643 = vunpack.c.h.b16 %v447
        %v1644 = vunpack.c.l.b16 %v448
        %v1645 = vunpack.c.l.b16 %v449
        %v1646 = vunpack.c.h.b16 %v449
        %v1647 = vunpack.c.l.b16 %v450
        %v1648 = vunpack.c.l.b16 %v451
        %v1649 = vunpack.c.h.b16 %v451
        %v1650 = vunpack.c.l.b16 %v452
        %v1651 = vunpack.c.l.b16 %v453
        %v1652 = vunpack.c.h.b16 %v453
        %v1653 = vunpack.c.l.b16 %v454
        %v1654 = vunpack.c.l.b16 %v455
        %v1655 = vunpack.c.h.b16 %v455
        %v1656 = vunpack.c.l.b16 %v456
        %v1657 = vunpack.c.l.b16 %v457
        %v1658 = vunpack.c.h.b16 %v457
        %v1659 = vunpack.c.l.b16 %v458
        %v1660 = vunpack.c.l.b16 %v459
        %v1661 = vunpack.c.h.b16 %v459
        %v1662 = vunpack.c.l.b16 %v460
        %v1663 = vunpack.c.l.b16 %v461
        %v1664 = vunpack.c.h.b16 %v461
        %v1665 = vunpack.c.l.b16 %v462
        %v1666 = vunpack.c.l.b16 %v463
        %v1667 = vunpack.c.h.b16 %v463
        %v1668 = vunpack.c.l.b16 %v464
        %v1669 = vunpack.c.l.b16 %v465
        %v1670 = vunpack.c.h.b16 %v465
        %v1671 = vunpack.c.l.b16 %v466
        %v1672 = vunpack.c.l.b16 %v467
        %v1673 = vunpack.c.h.b16 %v467
        %v1674 = vunpack.c.l.b16 %v468
        %v1675 = vunpack.c.l.b16 %v469
        %v1676 = vunpack.c.h.b16 %v469
        %v1677 = vunpack.c.l.b16 %v470
        %v1678 = vunpack.c.l.b16 %v471
        %v1679 = vunpack.c.h.b16 %v471
        %v1680 = vunpack.c.l.b16 %v472
        %v1681 = vunpack.c.l.b16 %v473
        %v1682 = vunpack.c.h.b16 %v473
        %v1683 = vunpack.c.l.b16 %v474
        %v1684 = vunpack.c.l.b16 %v475
        %v1685 = vunpack.c.h.b16 %v475
        %v1686 = vunpack.c.l.b16 %v476
        %v1687 = vunpack.c.l.b16 %v477
        %v1688 = vunpack.c.h.b16 %v477
        %v1689 = vunpack.c.l.b16 %v478
        %v1690 = vunpack.c.l.b16 %v479
        %v1691 = vunpack.c.h.b16 %v479
        %v1692 = vunpack.c.l.b16 %v480
        %v1693 = vunpack.c.l.b16 %v481
        %v1694 = vunpack.c.h.b16 %v481
        %v1695 = vunpack.c.l.b16 %v482
        %v1696 = vunpack.c.l.b16 %v483
        %v1697 = vunpack.c.h.b16 %v483
        %v1698 = vunpack.c.l.b16 %v484
        %v1699 = vunpack.c.l.b16 %v485
        %v1700 = vunpack.c.h.b16 %v485
        %v1701 = vunpack.c.l.b16 %v486
        %v1702 = vunpack.c.l.b16 %v487
        %v1703 = vunpack.c.h.b16 %v487
        %v1704 = vunpack.c.l.b16 %v488
        %v1705 = vunpack.c.l.b16 %v489
        %v1706 = vunpack.c.h.b16 %v489
        %v1707 = vunpack.c.l.b16 %v490
        %v1708 = vunpack.c.l.b16 %v491
        %v1709 = vunpack.c.h.b16 %v491
        %v1710 = vunpack.c.l.b16 %v492
        %v1711 = vunpack.c.l.b16 %v493
        %v1712 = vunpack.c.h.b16 %v493
        %v1713 = vunpack.c.l.b16 %v494
        %v1714 = vunpack.c.l.b16 %v495
        %v1715 = vunpack.c.h.b16 %v495
        %v1716 = vunpack.c.l.b16 %v496
        %v1717 = vunpack.c.l.b16 %v497
        %v1718 = vunpack.c.h.b16 %v497
        %v1719 = vunpack.c.l.b16 %v498
        %v1720 = vunpack.c.l.b16 %v499
        %v1721 = vunpack.c.h.b16 %v499
        %v1722 = vunpack.c.l.b16 %v500
        %v1723 = vunpack.c.l.b16 %v501
        %v1724 = vunpack.c.h.b16 %v501
        %v1725 = vunpack.c.l.b16 %v502
        %v1726 = vunpack.c.l.b16 %v503
        %v1727 = vunpack.c.h.b16 %v503
        %v1728 = vunpack.c.l.b16 %v504
        %v1729 = vunpack.c.l.b16 %v505
        %v1730 = vunpack.c.h.b16 %v505
        %v1731 = vunpack.c.l.b16 %v506
        %v1732 = vunpack.c.l.b16 %v507
        %v1733 = vunpack.c.h.b16 %v507
        %v1734 = vunpack.c.l.b16 %v508
        %v1735 = vunpack.c.l.b16 %v509
        %v1736 = vunpack.c.h.b16 %v509
        %v1737 = vunpack.c.l.b16 %v510
        %v1738 = vunpack.c.l.b16 %v511
        %v1739 = vunpack.c.h.b16 %v511
        %v1740 = vunpack.c.l.b16 %v512
        %v1741 = vunpack.c.l.b16 %v513
        %v1742 = vunpack.c.h.b16 %v513
        %v1743 = vunpack.c.l.b16 %v514
        %v1744 = vunpack.c.l.b16 %v515
        %v1745 = vunpack.c.h.b16 %v515
        %v1746 = vunpack.c.l.b16 %v516
        %v1747 = vunpack.c.l.b16 %v517
        %v1748 = vunpack.c.h.b16 %v517
        %v1749 = vunpack.c.l.b16 %v518
        %v1750 = vunpack.c.l.b16 %v519
        %v1751 = vunpack.c.h.b16 %v519
        %v1752 = vunpack.c.l.b16 %v520
        %v1753 = vunpack.c.l.b16 %v521
        %v1754 = vunpack.c.h.b16 %v521
        %v1755 = vunpack.c.l.b16 %v522
        %v1756 = vunpack.c.l.b16 %v523
        %v1757 = vunpack.c.h.b16 %v523
        %v1758 = vunpack.c.l.b16 %v524
        %v1759 = vunpack.c.l.b16 %v525
        %v1760 = vunpack.c.h.b16 %v525
        %v1761 = vunpack.c.l.b16 %v526
        %v1762 = vunpack.c.l.b16 %v527
        %v1763 = vunpack.c.h.b16 %v527
        %v1764 = vunpack.c.l.b16 %v528
        %v1765 = vunpack.c.l.b16 %v529
        %v1766 = vunpack.c.h.b16 %v529
        %v1767 = vunpack.c.l.b16 %v530
        %v1768 = vunpack.c.l.b16 %v531
        %v1769 = vunpack.c.h.b16 %v531
        %v1770 = vunpack.c.l.b16 %v532
        %v1771 = vunpack.c.l.b16 %v533
        %v1772 = vunpack.c.h.b16 %v533
        %v1773 = vunpack.c.l.b16 %v534
        %v1774 = vunpack.c.l.b16 %v535
        %v1775 = vunpack.c.h.b16 %v535
        %v1776 = vunpack.c.l.b16 %v536
        %v1777 = vunpack.c.l.b16 %v537
        %v1778 = vunpack.c.h.b16 %v537
        %v1779 = vunpack.c.l.b16 %v538
        %v1780 = vunpack.c.l.b16 %v539
        %v1781 = vunpack.c.h.b16 %v539
        %v1782 = vunpack.c.l.b16 %v540
        %v1783 = vunpack.c.l.b16 %v541
        %v1784 = vunpack.c.h.b16 %v541
        %v1785 = vunpack.c.l.b16 %v542
        %v1786 = vunpack.c.l.b16 %v543
        %v1787 = vunpack.c.h.b16 %v543
        %v1788 = vunpack.c.l.b16 %v544
        %v1789 = vunpack.c.l.b16 %v545
        %v1790 = vunpack.c.h.b16 %v545
        %v1791 = vunpack.c.l.b16 %v546
        %v1792 = vunpack.c.l.b16 %v547
        %v1793 = vunpack.c.h.b16 %v547
        %v1794 = vunpack.c.l.b16 %v548
        %v1795 = vunpack.c.l.b16 %v549
        %v1796 = vunpack.c.h.b16 %v549
        %v1797 = vunpack.c.l.b16 %v550
        %v1798 = vunpack.c.l.b16 %v551
        %v1799 = vunpack.c.h.b16 %v551
        %v1800 = vunpack.c.l.b16 %v552
        %v1801 = vunpack.c.l.b16 %v553
        %v1802 = vunpack.c.h.b16 %v553
        %v1803 = vunpack.c.l.b16 %v554
        %v1804 = vunpack.c.l.b16 %v555
        %v1805 = vunpack.c.h.b16 %v555
        %v1806 = vunpack.c.l.b16 %v556
        %v1807 = vunpack.c.l.b16 %v557
        %v1808 = vunpack.c.h.b16 %v557
        %v1809 = vunpack.c.l.b16 %v558
        %v1810 = vunpack.c.l.b16 %v559
        %v1811 = vunpack.c.h.b16 %v559
        %v1812 = vunpack.c.l.b16 %v560
        %v1813 = vunpack.c.l.b16 %v561
        %v1814 = vunpack.c.h.b16 %v561
        %v1815 = vunpack.c.l.b16 %v562
        %v1816 = vunpack.c.l.b16 %v563
        %v1817 = vunpack.c.h.b16 %v563
        %v1818 = vunpack.c.l.b16 %v564
        %v1819 = vunpack.c.l.b16 %v565
        %v1820 = vunpack.c.h.b16 %v565
        %v1821 = vunpack.c.l.b16 %v566
        %v1822 = vunpack.c.l.b16 %v567
        %v1823 = vunpack.c.h.b16 %v567
        %v1824 = vunpack.c.l.b16 %v568
        %v1825 = vunpack.c.l.b16 %v569
        %v1826 = vunpack.c.h.b16 %v569
        %v1827 = vunpack.c.l.b16 %v570
        %v1828 = vunpack.c.l.b16 %v571
        %v1829 = vunpack.c.h.b16 %v571
        %v1830 = vunpack.c.l.b16 %v572
        %v1831 = vunpack.c.l.b16 %v573
        %v1832 = vunpack.c.h.b16 %v573
        %v1833 = vunpack.c.l.b16 %v574
        %v1834 = vunpack.c.l.b16 %v575
        %v1835 = vunpack.c.h.b16 %v575
        %v1836 = vunpack.c.l.b16 %v576
        %v1837 = vunpack.c.l.b16 %v577
        %v1838 = vunpack.c.h.b16 %v577
        %v1839 = vunpack.c.l.b16 %v578
        %v1840 = vunpack.c.l.b16 %v579
        %v1841 = vunpack.c.h.b16 %v579
        %v1842 = vunpack.c.l.b16 %v580
        %v1843 = vunpack.c.l.b16 %v581
        %v1844 = vunpack.c.h.b16 %v581
        %v1845 = vunpack.c.l.b16 %v582
        %v1846 = vunpack.c.l.b16 %v583
        %v1847 = vunpack.c.h.b16 %v583
        %v1848 = vunpack.c.l.b16 %v584
        %v1849 = vunpack.c.l.b16 %v585
        %v1850 = vunpack.c.h.b16 %v585
        %v1851 = vunpack.c.l.b16 %v586
        %v1852 = vunpack.c.l.b16 %v587
        %v1853 = vunpack.c.h.b16 %v587
        %v1854 = vunpack.c.l.b16 %v588
        %v1855 = vunpack.c.l.b16 %v589
        %v1856 = vunpack.c.h.b16 %v589
        %v1857 = vunpack.c.l.b16 %v590
        %v1858 = vunpack.c.l.b16 %v591
        %v1859 = vunpack.c.h.b16 %v591
        %v1860 = vunpack.c.l.b16 %v592
        %v1861 = vunpack.c.l.b16 %v593
        %v1862 = vunpack.c.h.b16 %v593
        %v1863 = vunpack.c.l.b16 %v594
        %v1864 = vunpack.c.l.b16 %v595
        %v1865 = vunpack.c.h.b16 %v595
        %v1866 = vunpack.c.l.b16 %v596
        %v1867 = vunpack.c.l.b16 %v597
        %v1868 = vunpack.c.h.b16 %v597
        %v1869 = vunpack.c.l.b16 %v598
        %v1870 = vunpack.c.l.b16 %v599
        %v1871 = vunpack.c.h.b16 %v599
        %v1872 = vunpack.c.l.b16 %v600
        %v1873 = vunpack.c.l.b16 %v601
        %v1874 = vunpack.c.h.b16 %v601
        %v1875 = vunpack.c.l.b16 %v602
        %v1876 = vunpack.c.l.b16 %v603
        %v1877 = vunpack.c.h.b16 %v603
        %v1878 = vunpack.c.l.b16 %v604
        %v1879 = vunpack.c.l.b16 %v605
        %v1880 = vunpack.c.h.b16 %v605
        %v1881 = vunpack.c.l.b16 %v606
        %v1882 = vunpack.c.l.b16 %v607
        %v1883 = vunpack.c.h.b16 %v607
        %v1884 = vunpack.c.l.b16 %v608
        %v1885 = vunpack.c.l.b16 %v609
        %v1886 = vunpack.c.h.b16 %v609
        %v1887 = vunpack.c.l.b16 %v610
        %v1888 = vunpack.c.l.b16 %v611
        %v1889 = vunpack.c.h.b16 %v611
        %v1890 = vunpack.c.l.b16 %v612
        %v1891 = vunpack.c.l.b16 %v613
        %v1892 = vunpack.c.h.b16 %v613
        %v1893 = vunpack.c.l.b16 %v614
        %v1894 = vunpack.c.l.b16 %v615
        %v1895 = vunpack.c.h.b16 %v615
        %v1896 = vunpack.c.l.b16 %v616
        %v1897 = vunpack.c.l.b16 %v617
        %v1898 = vunpack.c.h.b16 %v617
        %v1899 = vunpack.c.l.b16 %v618
        %v1900 = vunpack.c.l.b16 %v619
        %v1901 = vunpack.c.h.b16 %v619
        %v1902 = vunpack.c.l.b16 %v620
        %v1903 = vunpack.c.l.b16 %v621
        %v1904 = vunpack.c.h.b16 %v621
        %v1905 = vunpack.c.l.b16 %v622
        %v1906 = vunpack.c.l.b16 %v623
        %v1907 = vunpack.c.h.b16 %v623
        %v1908 = vunpack.c.l.b16 %v624
        %v1909 = vunpack.c.l.b16 %v625
        %v1910 = vunpack.c.h.b16 %v625
        %v1911 = vunpack.c.l.b16 %v626
        %v1912 = vunpack.c.l.b16 %v627
        %v1913 = vunpack.c.h.b16 %v627
        %v1914 = vunpack.c.l.b16 %v628
        %v1915 = vunpack.c.l.b16 %v629
        %v1916 = vunpack.c.h.b16 %v629
        %v1917 = vunpack.c.l.b16 %v630
        %v1918 = vunpack.c.l.b16 %v631
        %v1919 = vunpack.c.h.b16 %v631
        %v1920 = vunpack.c.l.b16 %v632
        %v1921 = vunpack.c.l.b16 %v633
        %v1922 = vunpack.c.h.b16 %v633
        %v1923 = vunpack.c.l.b16 %v634
        %v1924 = vunpack.c.l.b16 %v635
        %v1925 = vunpack.c.h.b16 %v635
        %v1926 = vunpack.c.l.b16 %v636
        %v1927 = vunpack.c.l.b16 %v637
        %v1928 = vunpack.c.h.b16 %v637
        %v1929 = vunpack.c.l.b16 %v638
        %v1930 = vunpack.c.l.b16 %v639
        %v1931 = vunpack.c.h.b16 %v639
        %v1932 = vunpack.c.l.b16 %v640
        %v1933 = vunpack.c.l.b16 %v641
        %v1934 = vunpack.c.h.b16 %v641
        %v1935 = vunpack.c.l.b16 %v642
        %v1936 = vunpack.c.l.b16 %v643
        %v1937 = vunpack.c.h.b16 %v643
        %v1938 = vunpack.c.l.b16 %v644
        %v1939 = vunpack.c.l.b16 %v645
        %v1940 = vunpack.c.h.b16 %v645
        %v1941 = vunpack.c.l.b16 %v646
        %v1942 = vunpack.c.l.b16 %v647
        %v1943 = vunpack.c.h.b16 %v647
        %v1944 = vunpack.c.l.b16 %v648
        %v1945 = vunpack.c.l.b16 %v649
        %v1946 = vunpack.c.h.b16 %v649
        %v1947 = vunpack.c.l.b16 %v650
        %v1948 = vunpack.c.l.b16 %v651
        %v1949 = vunpack.c.h.b16 %v651
        %v1950 = vunpack.c.l.b16 %v652
        %v1951 = vunpack.c.l.b16 %v653
        %v1952 = vunpack.c.h.b16 %v653
        %v1953 = vunpack.c.l.b16 %v654
        %v1954 = vunpack.c.l.b16 %v655
        %v1955 = vunpack.c.h.b16 %v655
        %v1956 = vunpack.c.l.b16 %v656
        %v1957 = vunpack.c.l.b16 %v657
        %v1958 = vunpack.c.h.b16 %v657
        %v1959 = vunpack.c.l.b16 %v658
        %v1960 = vunpack.c.l.b16 %v659
        %v1961 = vunpack.c.h.b16 %v659
        %v1962 = vunpack.c.l.b16 %v660
        %v1963 = vunpack.c.l.b16 %v661
        %v1964 = vunpack.c.h.b16 %v661
        %v1965 = vunpack.c.l.b16 %v662
        %v1966 = vunpack.c.l.b16 %v663
        %v1967 = vunpack.c.h.b16 %v663
        %v1968 = vunpack.c.l.b16 %v664
        %v1969 = vunpack.c.l.b16 %v665
        %v1970 = vunpack.c.h.b16 %v665
        %v1971 = vunpack.c.l.b16 %v666
        %v1972 = vunpack.c.l.b16 %v667
        %v1973 = vunpack.c.h.b16 %v667
        %v1974 = vunpack.c.l.b16 %v668
        %v1975 = vunpack.c.l.b16 %v669
        %v1976 = vunpack.c.h.b16 %v669
        %v1977 = vunpack.c.l.b16 %v670
        %v1978 = vunpack.c.l.b16 %v671
        %v1979 = vunpack.c.h.b16 %v671
        %v1980 = vunpack.c.l.b16 %v672
        %v1981 = vunpack.c.l.b16 %v673
        %v1982 = vunpack.c.h.b16 %v673
        %v1983 = vunpack.c.l.b16 %v674
        %v1984 = vunpack.c.l.b16 %v675
        %v1985 = vunpack.c.h.b16 %v675
        %v1986 = vunpack.c.l.b16 %v676
        %v1987 = vunpack.c.l.b16 %v677
        %v1988 = vunpack.c.h.b16 %v677
        %v1989 = vunpack.c.l.b16 %v678
        %v1990 = vunpack.c.l.b16 %v679
        %v1991 = vunpack.c.h.b16 %v679
        %v1992 = vunpack.c.l.b16 %v680
        %v1993 = vunpack.c.l.b16 %v681
        %v1994 = vunpack.c.h.b16 %v681
        %v1995 = vunpack.c.l.b16 %v682
        %v1996 = vunpack.c.l.b16 %v683
        %v1997 = vunpack.c.h.b16 %v683
        %v1998 = vunpack.c.l.b16 %v684
        %v1999 = vunpack.c.l.b16 %v685
        %v2000 = vunpack.c.h.b16 %v685
        %v2001 = vunpack.c.l.b16 %v686
        %v2002 = vunpack.c.l.b16 %v687
        %v2003 = vunpack.c.h.b16 %v687
        %v2004 = vunpack.c.l.b16 %v688
        %v2005 = vunpack.c.l.b16 %v689
        %v2006 = vunpack.c.h.b16 %v689
        %v2007 = vunpack.c.l.b16 %v690
        %v2008 = vunpack.c.l.b16 %v691
        %v2009 = vunpack.c.h.b16 %v691
        %v2010 = vunpack.c.l.b16 %v692
        %v2011 = vunpack.c.l.b16 %v693
        %v2012 = vunpack.c.h.b16 %v693
        %v2013 = vunpack.c.l.b16 %v694
        %v2014 = vunpack.c.l.b16 %v695
        %v2015 = vunpack.c.h.b16 %v695
        %v2016 = vunpack.c.l.b16 %v696
        %v2017 = vunpack.c.l.b16 %v697
        %v2018 = vunpack.c.h.b16 %v697
        %v2019 = vunpack.c.l.b16 %v698
        %v2020 = vunpack.c.l.b16 %v699
        %v2021 = vunpack.c.h.b16 %v699
        %v2022 = vunpack.c.l.b16 %v700
        %v2023 = vunpack.c.l.b16 %v701
        %v2024 = vunpack.c.h.b16 %v701
        %v2025 = vunpack.c.l.b16 %v702
        %v2026 = vunpack.c.l.b16 %v703
        %v2027 = vunpack.c.h.b16 %v703
        %v2028 = vunpack.c.l.b16 %v704
        %v2029 = vunpack.c.l.b16 %v705
        %v2030 = vunpack.c.h.b16 %v705
        %v2031 = vunpack.c.l.b16 %v706
        %v2032 = vunpack.c.l.b16 %v707
        %v2033 = vunpack.c.h.b16 %v707
        %v2034 = vunpack.c.l.b16 %v708
        %v2035 = vunpack.c.l.b16 %v709
        %v2036 = vunpack.c.h.b16 %v709
        %v2037 = vunpack.c.l.b16 %v710
        %v2038 = vunpack.c.l.b16 %v711
        %v2039 = vunpack.c.h.b16 %v711
        %v2040 = vunpack.c.l.b16 %v712
        %v2041 = vunpack.c.l.b16 %v713
        %v2042 = vunpack.c.h.b16 %v713
        %v2043 = vunpack.c.l.b16 %v714
        %v2044 = vunpack.c.l.b16 %v715
        %v2045 = vunpack.c.h.b16 %v715
        %v2046 = vunpack.c.l.b16 %v716
        %v2047 = vunpack.c.l.b16 %v717
        %v2048 = vunpack.c.h.b16 %v717
        %v2049 = vunpack.c.l.b16 %v718
        %v2050 = vunpack.c.l.b16 %v719
        %v2051 = vunpack.c.h.b16 %v719
        %v2052 = vunpack.c.l.b16 %v720
        %v2053 = vunpack.c.l.b16 %v721
        %v2054 = vunpack.c.h.b16 %v721
        %v2055 = vunpack.c.l.b16 %v722
        %v2056 = vunpack.c.l.b16 %v723
        %v2057 = vunpack.c.h.b16 %v723
        %v2058 = vunpack.c.l.b16 %v724
        %v2059 = vunpack.c.l.b16 %v725
        %v2060 = vunpack.c.h.b16 %v725
        %v2061 = vunpack.c.l.b16 %v726
        %v2062 = vunpack.c.l.b16 %v727
        %v2063 = vunpack.c.h.b16 %v727
        %v2064 = vunpack.c.l.b16 %v728
        %v2065 = vunpack.c.l.b16 %v729
        %v2066 = vunpack.c.h.b16 %v729
        %v2067 = vunpack.c.l.b16 %v730
        %v2068 = vunpack.c.l.b16 %v731
        %v2069 = vunpack.c.h.b16 %v731
        %v2070 = vunpack.c.l.b16 %v732
        %v2071 = vunpack.c.l.b16 %v733
        %v2072 = vunpack.c.h.b16 %v733
        %v2073 = vunpack.c.l.b16 %v734
        %v2074 = vunpack.c.l.b16 %v735
        %v2075 = vunpack.c.h.b16 %v735
        %v2076 = vunpack.c.l.b16 %v736
        %v2077 = vunpack.c.l.b16 %v737
        %v2078 = vunpack.c.h.b16 %v737
        %v2079 = vunpack.c.l.b16 %v738
        %v2080 = vunpack.c.l.b16 %v739
        %v2081 = vunpack.c.h.b16 %v739
        %v2082 = vunpack.c.l.b16 %v740
        %v2083 = vunpack.c.l.b16 %v741
        %v2084 = vunpack.c.h.b16 %v741
        %v2085 = vunpack.c.l.b16 %v742
        %v2086 = vunpack.c.l.b16 %v743
        %v2087 = vunpack.c.h.b16 %v743
        %v2088 = vunpack.c.l.b16 %v744
        %v2089 = vunpack.c.l.b16 %v745
        %v2090 = vunpack.c.h.b16 %v745
        %v2091 = vunpack.c.l.b16 %v746
        %v2092 = vunpack.c.l.b16 %v747
        %v2093 = vunpack.c.h.b16 %v747
        %v2094 = vunpack.c.l.b16 %v748
        %v2095 = vunpack.c.l.b16 %v749
        %v2096 = vunpack.c.h.b16 %v749
        %v2097 = vunpack.c.l.b16 %v750
        %v2098 = vunpack.c.l.b16 %v751
        %v2099 = vunpack.c.h.b16 %v751
        %v2100 = vunpack.c.l.b16 %v752
        %v2101 = vunpack.c.l.b16 %v753
        %v2102 = vunpack.c.h.b16 %v753
        %v2103 = vunpack.c.l.b16 %v754
        %v2104 = vunpack.c.l.b16 %v755
        %v2105 = vunpack.c.h.b16 %v755
        %v2106 = vunpack.c.l.b16 %v756
        %v2107 = vunpack.c.l.b16 %v757
        %v2108 = vunpack.c.h.b16 %v757
        %v2109 = vunpack.c.l.b16 %v758
        %v2110 = vunpack.c.l.b16 %v759
        %v2111 = vunpack.c.h.b16 %v759
        %v2112 = vunpack.c.l.b16 %v760
        %v2113 = vunpack.c.l.b16 %v761
        %v2114 = vunpack.c.h.b16 %v761
        %v2115 = vunpack.c.l.b16 %v762
        %v2116 = vunpack.c.l.b16 %v763
        %v2117 = vunpack.c.h.b16 %v763
        %v2118 = vunpack.c.l.b16 %v764
        %v2119 = vunpack.c.l.b16 %v765
        %v2120 = vunpack.c.h.b16 %v765
        %v2121 = vunpack.c.l.b16 %v766
        %v2122 = vunpack.c.l.b16 %v767
        %v2123 = vunpack.c.h.b16 %v767
        %v2124 = vunpack.c.l.b16 %v768
        %v2125 = vunpack.c.l.b16 %v769
        %v2126 = vunpack.c.h.b16 %v769
        %v2127 = vunpack.c.l.b16 %v770
        %v2128 = vunpack.c.l.b16 %v771
        %v2129 = vunpack.c.h.b16 %v771
        %v2130 = vunpack.c.l.b16 %v772
        %v2131 = vunpack.c.l.b16 %v773
        %v2132 = vunpack.c.h.b16 %v773
        %v2133 = vunpack.c.l.b16 %v774
        %v2134 = vunpack.c.l.b16 %v775
        %v2135 = vunpack.c.h.b16 %v775
        %v2136 = vunpack.c.l.b16 %v776
        %v2137 = vpack.c.b16 %v1372, %v1369
        %v2138 = vpack.c.b16 %v1373, %v1370
        %v2139 = vpack.c.b16 %v1374, %v1371
        %v2140 = vpack.c.b16 %v1378, %v1375
        %v2141 = vpack.c.b16 %v1379, %v1376
        %v2142 = vpack.c.b16 %v1380, %v1377
        %v2143 = vpack.c.b16 %v1384, %v1381
        %v2144 = vpack.c.b16 %v1385, %v1382
        %v2145 = vpack.c.b16 %v1386, %v1383
        %v2146 = vpack.c.b16 %v1390, %v1387
        %v2147 = vpack.c.b16 %v1391, %v1388
        %v2148 = vpack.c.b16 %v1392, %v1389
        %v2149 = vpack.c.b16 %v1396, %v1393
        %v2150 = vpack.c.b16 %v1397, %v1394
        %v2151 = vpack.c.b16 %v1398, %v1395
        %v2152 = vpack.c.b16 %v1402, %v1399
        %v2153 = vpack.c.b16 %v1403, %v1400
        %v2154 = vpack.c.b16 %v1404, %v1401
        %v2155 = vpack.c.b16 %v1408, %v1405
        %v2156 = vpack.c.b16 %v1409, %v1406
        %v2157 = vpack.c.b16 %v1410, %v1407
        %v2158 = vpack.c.b16 %v1414, %v1411
        %v2159 = vpack.c.b16 %v1415, %v1412
        %v2160 = vpack.c.b16 %v1416, %v1413
        %v2161 = vpack.c.b16 %v1420, %v1417
        %v2162 = vpack.c.b16 %v1421, %v1418
        %v2163 = vpack.c.b16 %v1422, %v1419
        %v2164 = vpack.c.b16 %v1426, %v1423
        %v2165 = vpack.c.b16 %v1427, %v1424
        %v2166 = vpack.c.b16 %v1428, %v1425
        %v2167 = vpack.c.b16 %v1432, %v1429
        %v2168 = vpack.c.b16 %v1433, %v1430
        %v2169 = vpack.c.b16 %v1434, %v1431
        %v2170 = vpack.c.b16 %v1438, %v1435
        %v2171 = vpack.c.b16 %v1439, %v1436
        %v2172 = vpack.c.b16 %v1440, %v1437
        %v2173 = vpack.c.b16 %v1444, %v1441
        %v2174 = vpack.c.b16 %v1445, %v1442
        %v2175 = vpack.c.b16 %v1446, %v1443
        %v2176 = vpack.c.b16 %v1450, %v1447
        %v2177 = vpack.c.b16 %v1451, %v1448
        %v2178 = vpack.c.b16 %v1452, %v1449
        %v2179 = vpack.c.b16 %v1456, %v1453
        %v2180 = vpack.c.b16 %v1457, %v1454
        %v2181 = vpack.c.b16 %v1458, %v1455
        %v2182 = vpack.c.b16 %v1462, %v1459
        %v2183 = vpack.c.b16 %v1463, %v1460
        %v2184 = vpack.c.b16 %v1464, %v1461
        %v2185 = vpack.c.b16 %v1468, %v1465
        %v2186 = vpack.c.b16 %v1469, %v1466
        %v2187 = vpack.c.b16 %v1470, %v1467
        %v2188 = vpack.c.b16 %v1474, %v1471
        %v2189 = vpack.c.b16 %v1475, %v1472
        %v2190 = vpack.c.b16 %v1476, %v1473
        %v2191 = vpack.c.b16 %v1480, %v1477
        %v2192 = vpack.c.b16 %v1481, %v1478
        %v2193 = vpack.c.b16 %v1482, %v1479
        %v2194 = vpack.c.b16 %v1486, %v1483
        %v2195 = vpack.c.b16 %v1487, %v1484
        %v2196 = vpack.c.b16 %v1488, %v1485
        %v2197 = vpack.c.b16 %v1492, %v1489
        %v2198 = vpack.c.b16 %v1493, %v1490
        %v2199 = vpack.c.b16 %v1494, %v1491
        %v2200 = vpack.c.b16 %v1498, %v1495
        %v2201 = vpack.c.b16 %v1499, %v1496
        %v2202 = vpack.c.b16 %v1500, %v1497
        %v2203 = vpack.c.b16 %v1504, %v1501
        %v2204 = vpack.c.b16 %v1505, %v1502
        %v2205 = vpack.c.b16 %v1506, %v1503
        %v2206 = vpack.c.b16 %v1510, %v1507
        %v2207 = vpack.c.b16 %v1511, %v1508
        %v2208 = vpack.c.b16 %v1512, %v1509
        %v2209 = vpack.c.b16 %v1516, %v1513
        %v2210 = vpack.c.b16 %v1517, %v1514
        %v2211 = vpack.c.b16 %v1518, %v1515
        %v2212 = vpack.c.b16 %v1522, %v1519
        %v2213 = vpack.c.b16 %v1523, %v1520
        %v2214 = vpack.c.b16 %v1524, %v1521
        %v2215 = vpack.c.b16 %v1528, %v1525
        %v2216 = vpack.c.b16 %v1529, %v1526
        %v2217 = vpack.c.b16 %v1530, %v1527
        %v2218 = vpack.c.b16 %v1534, %v1531
        %v2219 = vpack.c.b16 %v1535, %v1532
        %v2220 = vpack.c.b16 %v1536, %v1533
        %v2221 = vpack.c.b16 %v1540, %v1537
        %v2222 = vpack.c.b16 %v1541, %v1538
        %v2223 = vpack.c.b16 %v1542, %v1539
        %v2224 = vpack.c.b16 %v1546, %v1543
        %v2225 = vpack.c.b16 %v1547, %v1544
        %v2226 = vpack.c.b16 %v1548, %v1545
        %v2227 = vpack.c.b16 %v1552, %v1549
        %v2228 = vpack.c.b16 %v1553, %v1550
        %v2229 = vpack.c.b16 %v1554, %v1551
        %v2230 = vpack.c.b16 %v1558, %v1555
        %v2231 = vpack.c.b16 %v1559, %v1556
        %v2232 = vpack.c.b16 %v1560, %v1557
        %v2233 = vpack.c.b16 %v1564, %v1561
        %v2234 = vpack.c.b16 %v1565, %v1562
        %v2235 = vpack.c.b16 %v1566, %v1563
        %v2236 = vpack.c.b16 %v1570, %v1567
        %v2237 = vpack.c.b16 %v1571, %v1568
        %v2238 = vpack.c.b16 %v1572, %v1569
        %v2239 = vpack.c.b16 %v1576, %v1573
        %v2240 = vpack.c.b16 %v1577, %v1574
        %v2241 = vpack.c.b16 %v1578, %v1575
        %v2242 = vpack.c.b16 %v1582, %v1579
        %v2243 = vpack.c.b16 %v1583, %v1580
        %v2244 = vpack.c.b16 %v1584, %v1581
        %v2245 = vpack.c.b16 %v1588, %v1585
        %v2246 = vpack.c.b16 %v1589, %v1586
        %v2247 = vpack.c.b16 %v1590, %v1587
        %v2248 = vpack.c.b16 %v1594, %v1591
        %v2249 = vpack.c.b16 %v1595, %v1592
        %v2250 = vpack.c.b16 %v1596, %v1593
        %v2251 = vpack.c.b16 %v1600, %v1597
        %v2252 = vpack.c.b16 %v1601, %v1598
        %v2253 = vpack.c.b16 %v1602, %v1599
        %v2254 = vpack.c.b16 %v1606, %v1603
        %v2255 = vpack.c.b16 %v1607, %v1604
        %v2256 = vpack.c.b16 %v1608, %v1605
        %v2257 = vpack.c.b16 %v1612, %v1609
        %v2258 = vpack.c.b16 %v1613, %v1610
        %v2259 = vpack.c.b16 %v1614, %v1611
        %v2260 = vpack.c.b16 %v1618, %v1615
        %v2261 = vpack.c.b16 %v1619, %v1616
        %v2262 = vpack.c.b16 %v1620, %v1617
        %v2263 = vpack.c.b16 %v1624, %v1621
        %v2264 = vpack.c.b16 %v1625, %v1622
        %v2265 = vpack.c.b16 %v1626, %v1623
        %v2266 = vpack.c.b16 %v1630, %v1627
        %v2267 = vpack.c.b16 %v1631, %v1628
        %v2268 = vpack.c.b16 %v1632, %v1629
        %v2269 = vpack.c.b16 %v1636, %v1633
        %v2270 = vpack.c.b16 %v1637, %v1634
        %v2271 = vpack.c.b16 %v1638, %v1635
        %v2272 = vpack.c.b16 %v1642, %v1639
        %v2273 = vpack.c.b16 %v1643, %v1640
        %v2274 = vpack.c.b16 %v1644, %v1641
        %v2275 = vpack.c.b16 %v1648, %v1645
        %v2276 = vpack.c.b16 %v1649, %v1646
        %v2277 = vpack.c.b16 %v1650, %v1647
        %v2278 = vpack.c.b16 %v1654, %v1651
        %v2279 = vpack.c.b16 %v1655, %v1652
        %v2280 = vpack.c.b16 %v1656, %v1653
        %v2281 = vpack.c.b16 %v1660, %v1657
        %v2282 = vpack.c.b16 %v1661, %v1658
        %v2283 = vpack.c.b16 %v1662, %v1659
        %v2284 = vpack.c.b16 %v1666, %v1663
        %v2285 = vpack.c.b16 %v1667, %v1664
        %v2286 = vpack.c.b16 %v1668, %v1665
        %v2287 = vpack.c.b16 %v1672, %v1669
        %v2288 = vpack.c.b16 %v1673, %v1670
        %v2289 = vpack.c.b16 %v1674, %v1671
        %v2290 = vpack.c.b16 %v1678, %v1675
        %v2291 = vpack.c.b16 %v1679, %v1676
        %v2292 = vpack.c.b16 %v1680, %v1677
        %v2293 = vpack.c.b16 %v1684, %v1681
        %v2294 = vpack.c.b16 %v1685, %v1682
        %v2295 = vpack.c.b16 %v1686, %v1683
        %v2296 = vpack.c.b16 %v1690, %v1687
        %v2297 = vpack.c.b16 %v1691, %v1688
        %v2298 = vpack.c.b16 %v1692, %v1689
        %v2299 = vpack.c.b16 %v1696, %v1693
        %v2300 = vpack.c.b16 %v1697, %v1694
        %v2301 = vpack.c.b16 %v1698, %v1695
        %v2302 = vpack.c.b16 %v1702, %v1699
        %v2303 = vpack.c.b16 %v1703, %v1700
        %v2304 = vpack.c.b16 %v1704, %v1701
        %v2305 = vpack.c.b16 %v1708, %v1705
        %v2306 = vpack.c.b16 %v1709, %v1706
        %v2307 = vpack.c.b16 %v1710, %v1707
        %v2308 = vpack.c.b16 %v1714, %v1711
        %v2309 = vpack.c.b16 %v1715, %v1712
        %v2310 = vpack.c.b16 %v1716, %v1713
        %v2311 = vpack.c.b16 %v1720, %v1717
        %v2312 = vpack.c.b16 %v1721, %v1718
        %v2313 = vpack.c.b16 %v1722, %v1719
        %v2314 = vpack.c.b16 %v1726, %v1723
        %v2315 = vpack.c.b16 %v1727, %v1724
        %v2316 = vpack.c.b16 %v1728, %v1725
        %v2317 = vpack.c.b16 %v1732, %v1729
        %v2318 = vpack.c.b16 %v1733, %v1730
        %v2319 = vpack.c.b16 %v1734, %v1731
        %v2320 = vpack.c.b16 %v1738, %v1735
        %v2321 = vpack.c.b16 %v1739, %v1736
        %v2322 = vpack.c.b16 %v1740, %v1737
        %v2323 = vpack.c.b16 %v1744, %v1741
        %v2324 = vpack.c.b16 %v1745, %v1742
        %v2325 = vpack.c.b16 %v1746, %v1743
        %v2326 = vpack.c.b16 %v1750, %v1747
        %v2327 = vpack.c.b16 %v1751, %v1748
        %v2328 = vpack.c.b16 %v1752, %v1749
        %v2329 = vpack.c.b16 %v1756, %v1753
        %v2330 = vpack.c.b16 %v1757, %v1754
        %v2331 = vpack.c.b16 %v1758, %v1755
        %v2332 = vpack.c.b16 %v1762, %v1759
        %v2333 = vpack.c.b16 %v1763, %v1760
        %v2334 = vpack.c.b16 %v1764, %v1761
        %v2335 = vpack.c.b16 %v1768, %v1765
        %v2336 = vpack.c.b16 %v1769, %v1766
        %v2337 = vpack.c.b16 %v1770, %v1767
        %v2338 = vpack.c.b16 %v1774, %v1771
        %v2339 = vpack.c.b16 %v1775, %v1772
        %v2340 = vpack.c.b16 %v1776, %v1773
        %v2341 = vpack.c.b16 %v1780, %v1777
        %v2342 = vpack.c.b16 %v1781, %v1778
        %v2343 = vpack.c.b16 %v1782, %v1779
        %v2344 = vpack.c.b16 %v1786, %v1783
        %v2345 = vpack.c.b16 %v1787, %v1784
        %v2346 = vpack.c.b16 %v1788, %v1785
        %v2347 = vpack.c.b16 %v1792, %v1789
        %v2348 = vpack.c.b16 %v1793, %v1790
        %v2349 = vpack.c.b16 %v1794, %v1791
        %v2350 = vpack.c.b16 %v1798, %v1795
        %v2351 = vpack.c.b16 %v1799, %v1796
        %v2352 = vpack.c.b16 %v1800, %v1797
        %v2353 = vpack.c.b16 %v1804, %v1801
        %v2354 = vpack.c.b16 %v1805, %v1802
        %v2355 = vpack.c.b16 %v1806, %v1803
        %v2356 = vpack.c.b16 %v1810, %v1807
        %v2357 = vpack.c.b16 %v1811, %v1808
        %v2358 = vpack.c.b16 %v1812, %v1809
        %v2359 = vpack.c.b16 %v1816, %v1813
        %v2360 = vpack.c.b16 %v1817, %v1814
        %v2361 = vpack.c.b16 %v1818, %v1815
        %v2362 = vpack.c.b16 %v1822, %v1819
        %v2363 = vpack.c.b16 %v1823, %v1820
        %v2364 = vpack.c.b16 %v1824, %v1821
        %v2365 = vpack.c.b16 %v1828, %v1825
        %v2366 = vpack.c.b16 %v1829, %v1826
        %v2367 = vpack.c.b16 %v1830, %v1827
        %v2368 = vpack.c.b16 %v1834, %v1831
        %v2369 = vpack.c.b16 %v1835, %v1832
        %v2370 = vpack.c.b16 %v1836, %v1833
        %v2371 = vpack.c.b16 %v1840, %v1837
        %v2372 = vpack.c.b16 %v1841, %v1838
        %v2373 = vpack.c.b16 %v1842, %v1839
        %v2374 = vpack.c.b16 %v1846, %v1843
        %v2375 = vpack.c.b16 %v1847, %v1844
        %v2376 = vpack.c.b16 %v1848, %v1845
        %v2377 = vpack.c.b16 %v1852, %v1849
        %v2378 = vpack.c.b16 %v1853, %v1850
        %v2379 = vpack.c.b16 %v1854, %v1851
        %v2380 = vpack.c.b16 %v1858, %v1855
        %v2381 = vpack.c.b16 %v1859, %v1856
        %v2382 = vpack.c.b16 %v1860, %v1857
        %v2383 = vpack.c.b16 %v1864, %v1861
        %v2384 = vpack.c.b16 %v1865, %v1862
        %v2385 = vpack.c.b16 %v1866, %v1863
        %v2386 = vpack.c.b16 %v1870, %v1867
        %v2387 = vpack.c.b16 %v1871, %v1868
        %v2388 = vpack.c.b16 %v1872, %v1869
        %v2389 = vpack.c.b16 %v1876, %v1873
        %v2390 = vpack.c.b16 %v1877, %v1874
        %v2391 = vpack.c.b16 %v1878, %v1875
        %v2392 = vpack.c.b16 %v1882, %v1879
        %v2393 = vpack.c.b16 %v1883, %v1880
        %v2394 = vpack.c.b16 %v1884, %v1881
        %v2395 = vpack.c.b16 %v1888, %v1885
        %v2396 = vpack.c.b16 %v1889, %v1886
        %v2397 = vpack.c.b16 %v1890, %v1887
        %v2398 = vpack.c.b16 %v1894, %v1891
        %v2399 = vpack.c.b16 %v1895, %v1892
        %v2400 = vpack.c.b16 %v1896, %v1893
        %v2401 = vpack.c.b16 %v1900, %v1897
        %v2402 = vpack.c.b16 %v1901, %v1898
        %v2403 = vpack.c.b16 %v1902, %v1899
        %v2404 = vpack.c.b16 %v1906, %v1903
        %v2405 = vpack.c.b16 %v1907, %v1904
        %v2406 = vpack.c.b16 %v1908, %v1905
        %v2407 = vpack.c.b16 %v1912, %v1909
        %v2408 = vpack.c.b16 %v1913, %v1910
        %v2409 = vpack.c.b16 %v1914, %v1911
        %v2410 = vpack.c.b16 %v1918, %v1915
        %v2411 = vpack.c.b16 %v1919, %v1916
        %v2412 = vpack.c.b16 %v1920, %v1917
        %v2413 = vpack.c.b16 %v1924, %v1921
        %v2414 = vpack.c.b16 %v1925, %v1922
        %v2415 = vpack.c.b16 %v1926, %v1923
        %v2416 = vpack.c.b16 %v1930, %v1927
        %v2417 = vpack.c.b16 %v1931, %v1928
        %v2418 = vpack.c.b16 %v1932, %v1929
        %v2419 = vpack.c.b16 %v1936, %v1933
        %v2420 = vpack.c.b16 %v1937, %v1934
        %v2421 = vpack.c.b16 %v1938, %v1935
        %v2422 = vpack.c.b16 %v1942, %v1939
        %v2423 = vpack.c.b16 %v1943, %v1940
        %v2424 = vpack.c.b16 %v1944, %v1941
        %v2425 = vpack.c.b16 %v1948, %v1945
        %v2426 = vpack.c.b16 %v1949, %v1946
        %v2427 = vpack.c.b16 %v1950, %v1947
        %v2428 = vpack.c.b16 %v1954, %v1951
        %v2429 = vpack.c.b16 %v1955, %v1952
        %v2430 = vpack.c.b16 %v1956, %v1953
        %v2431 = vpack.c.b16 %v1960, %v1957
        %v2432 = vpack.c.b16 %v1961, %v1958
        %v2433 = vpack.c.b16 %v1962, %v1959
        %v2434 = vpack.c.b16 %v1966, %v1963
        %v2435 = vpack.c.b16 %v1967, %v1964
        %v2436 = vpack.c.b16 %v1968, %v1965
        %v2437 = vpack.c.b16 %v1972, %v1969
        %v2438 = vpack.c.b16 %v1973, %v1970
        %v2439 = vpack.c.b16 %v1974, %v1971
        %v2440 = vpack.c.b16 %v1978, %v1975
        %v2441 = vpack.c.b16 %v1979, %v1976
        %v2442 = vpack.c.b16 %v1980, %v1977
        %v2443 = vpack.c.b16 %v1984, %v1981
        %v2444 = vpack.c.b16 %v1985, %v1982
        %v2445 = vpack.c.b16 %v1986, %v1983
        %v2446 = vpack.c.b16 %v1990, %v1987
        %v2447 = vpack.c.b16 %v1991, %v1988
        %v2448 = vpack.c.b16 %v1992, %v1989
        %v2449 = vpack.c.b16 %v1996, %v1993
        %v2450 = vpack.c.b16 %v1997, %v1994
        %v2451 = vpack.c.b16 %v1998, %v1995
        %v2452 = vpack.c.b16 %v2002, %v1999
        %v2453 = vpack.c.b16 %v2003, %v2000
        %v2454 = vpack.c.b16 %v2004, %v2001
        %v2455 = vpack.c.b16 %v2008, %v2005
        %v2456 = vpack.c.b16 %v2009, %v2006
        %v2457 = vpack.c.b16 %v2010, %v2007
        %v2458 = vpack.c.b16 %v2014, %v2011
        %v2459 = vpack.c.b16 %v2015, %v2012
        %v2460 = vpack.c.b16 %v2016, %v2013
        %v2461 = vpack.c.b16 %v2020, %v2017
        %v2462 = vpack.c.b16 %v2021, %v2018
        %v2463 = vpack.c.b16 %v2022, %v2019
        %v2464 = vpack.c.b16 %v2026, %v2023
        %v2465 = vpack.c.b16 %v2027, %v2024
        %v2466 = vpack.c.b16 %v2028, %v2025
        %v2467 = vpack.c.b16 %v2032, %v2029
        %v2468 = vpack.c.b16 %v2033, %v2030
        %v2469 = vpack.c.b16 %v2034, %v2031
        %v2470 = vpack.c.b16 %v2038, %v2035
        %v2471 = vpack.c.b16 %v2039, %v2036
        %v2472 = vpack.c.b16 %v2040, %v2037
        %v2473 = vpack.c.b16 %v2044, %v2041
        %v2474 = vpack.c.b16 %v2045, %v2042
        %v2475 = vpack.c.b16 %v2046, %v2043
        %v2476 = vpack.c.b16 %v2050, %v2047
        %v2477 = vpack.c.b16 %v2051, %v2048
        %v2478 = vpack.c.b16 %v2052, %v2049
        %v2479 = vpack.c.b16 %v2056, %v2053
        %v2480 = vpack.c.b16 %v2057, %v2054
        %v2481 = vpack.c.b16 %v2058, %v2055
        %v2482 = vpack.c.b16 %v2062, %v2059
        %v2483 = vpack.c.b16 %v2063, %v2060
        %v2484 = vpack.c.b16 %v2064, %v2061
        %v2485 = vpack.c.b16 %v2068, %v2065
        %v2486 = vpack.c.b16 %v2069, %v2066
        %v2487 = vpack.c.b16 %v2070, %v2067
        %v2488 = vpack.c.b16 %v2074, %v2071
        %v2489 = vpack.c.b16 %v2075, %v2072
        %v2490 = vpack.c.b16 %v2076, %v2073
        %v2491 = vpack.c.b16 %v2080, %v2077
        %v2492 = vpack.c.b16 %v2081, %v2078
        %v2493 = vpack.c.b16 %v2082, %v2079
        %v2494 = vpack.c.b16 %v2086, %v2083
        %v2495 = vpack.c.b16 %v2087, %v2084
        %v2496 = vpack.c.b16 %v2088, %v2085
        %v2497 = vpack.c.b16 %v2092, %v2089
        %v2498 = vpack.c.b16 %v2093, %v2090
        %v2499 = vpack.c.b16 %v2094, %v2091
        %v2500 = vpack.c.b16 %v2098, %v2095
        %v2501 = vpack.c.b16 %v2099, %v2096
        %v2502 = vpack.c.b16 %v2100, %v2097
        %v2503 = vpack.c.b16 %v2104, %v2101
        %v2504 = vpack.c.b16 %v2105, %v2102
        %v2505 = vpack.c.b16 %v2106, %v2103
        %v2506 = vpack.c.b16 %v2110, %v2107
        %v2507 = vpack.c.b16 %v2111, %v2108
        %v2508 = vpack.c.b16 %v2112, %v2109
        %v2509 = vpack.c.b16 %v2116, %v2113
        %v2510 = vpack.c.b16 %v2117, %v2114
        %v2511 = vpack.c.b16 %v2118, %v2115
        %v2512 = vpack.c.b16 %v2122, %v2119
        %v2513 = vpack.c.b16 %v2123, %v2120
        %v2514 = vpack.c.b16 %v2124, %v2121
        %v2515 = vpack.c.b16 %v2128, %v2125
        %v2516 = vpack.c.b16 %v2129, %v2126
        %v2517 = vpack.c.b16 %v2130, %v2127
        %v2518 = vpack.c.b16 %v2134, %v2131
        %v2519 = vpack.c.b16 %v2135, %v2132
        %v2520 = vpack.c.b16 %v2136, %v2133
        %2905 = vmatprep.subr.bf16.mxu0 %v2138
        %2906 = vmatpush1.bf16.msra.mxu0 %v2137
        %2907 = vmatprep.subr.bf16.mxu0 %v2141
        %2908 = vmatpush1.bf16.msra.mxu0 %v2140
        %2909 = vmatprep.subr.bf16.mxu0 %v2144
        %2910 = vmatpush1.bf16.msra.mxu0 %v2143
        %2911 = vmatprep.subr.bf16.mxu0 %v2147
        %2912 = vmatpush1.bf16.msra.mxu0 %v2146
        %2913 = vmatprep.subr.bf16.mxu0 %v2150
        %2914 = vmatpush1.bf16.msra.mxu0 %v2149
        %2915 = vmatprep.subr.bf16.mxu0 %v2153
        %2916 = vmatpush1.bf16.msra.mxu0 %v2152
        %2917 = vmatprep.subr.bf16.mxu0 %v2156
        %2918 = vmatpush1.bf16.msra.mxu0 %v2155
        %2919 = vmatprep.subr.bf16.mxu0 %v2159
        %2920 = vmatpush1.bf16.msra.mxu0 %v2158
        %2921 = vmatprep.subr.bf16.mxu0 %v2162
        %2922 = vmatpush1.bf16.msra.mxu0 %v2161
        %2923 = vmatprep.subr.bf16.mxu0 %v2165
        %2924 = vmatpush1.bf16.msra.mxu0 %v2164
        %2925 = vmatprep.subr.bf16.mxu0 %v2168
        %2926 = vmatpush1.bf16.msra.mxu0 %v2167
        %2927 = vmatprep.subr.bf16.mxu0 %v2171
        %2928 = vmatpush1.bf16.msra.mxu0 %v2170
        %2929 = vmatprep.subr.bf16.mxu0 %v2174
        %2930 = vmatpush1.bf16.msra.mxu0 %v2173
        %2931 = vmatprep.subr.bf16.mxu0 %v2177
        %2932 = vmatpush1.bf16.msra.mxu0 %v2176
        %2933 = vmatprep.subr.bf16.mxu0 %v2180
        %2934 = vmatpush1.bf16.msra.mxu0 %v2179
        %2935 = vmatprep.subr.bf16.mxu0 %v2183
        %2936 = vmatpush1.bf16.msra.mxu0 %v2182
        %2937 = vmatprep.mubr.bf16.mxu0 %v826
        %2938 = vmatmul.mubr.bf16.gmra.mrb[0].mxu0 %v825
        %v2939 = vpop.f32.mrb[0].mxu0
        %v2940 = vadd.f32 0.0, %v2939
        %v2941 = vpop.f32.mrb[0].mxu0
        %v2942 = vadd.f32 0.0, %v2941
        %v2943 = vpop.f32.mrb[0].mxu0
        %v2944 = vadd.f32 0.0, %v2943
        %v2945 = vpop.f32.mrb[0].mxu0
        %v2946 = vadd.f32 0.0, %v2945
        %2947 = vdwg.mxu0
        %2948 = vmatprep.subr.bf16.mxu0 %v2186
        %2949 = vmatpush1.bf16.msra.mxu0 %v2185
        %2950 = vmatprep.subr.bf16.mxu0 %v2189
        %2951 = vmatpush1.bf16.msra.mxu0 %v2188
        %2952 = vmatprep.subr.bf16.mxu0 %v2192
        %2953 = vmatpush1.bf16.msra.mxu0 %v2191
        %2954 = vmatprep.subr.bf16.mxu0 %v2195
        %2955 = vmatpush1.bf16.msra.mxu0 %v2194
        %2956 = vmatprep.subr.bf16.mxu0 %v2198
        %2957 = vmatpush1.bf16.msra.mxu0 %v2197
        %2958 = vmatprep.subr.bf16.mxu0 %v2201
        %2959 = vmatpush1.bf16.msra.mxu0 %v2200
        %2960 = vmatprep.subr.bf16.mxu0 %v2204
        %2961 = vmatpush1.bf16.msra.mxu0 %v2203
        %2962 = vmatprep.subr.bf16.mxu0 %v2207
        %2963 = vmatpush1.bf16.msra.mxu0 %v2206
        %2964 = vmatprep.subr.bf16.mxu0 %v2210
        %2965 = vmatpush1.bf16.msra.mxu0 %v2209
        %2966 = vmatprep.subr.bf16.mxu0 %v2213
        %2967 = vmatpush1.bf16.msra.mxu0 %v2212
        %2968 = vmatprep.subr.bf16.mxu0 %v2216
        %2969 = vmatpush1.bf16.msra.mxu0 %v2215
        %2970 = vmatprep.subr.bf16.mxu0 %v2219
        %2971 = vmatpush1.bf16.msra.mxu0 %v2218
        %2972 = vmatprep.subr.bf16.mxu0 %v2222
        %2973 = vmatpush1.bf16.msra.mxu0 %v2221
        %2974 = vmatprep.subr.bf16.mxu0 %v2225
        %2975 = vmatpush1.bf16.msra.mxu0 %v2224
        %2976 = vmatprep.subr.bf16.mxu0 %v2228
        %2977 = vmatpush1.bf16.msra.mxu0 %v2227
        %2978 = vmatprep.subr.bf16.mxu0 %v2231
        %2979 = vmatpush1.bf16.msra.mxu0 %v2230
        %2980 = vmatprep.mubr.bf16.mxu0 %v828
        %2981 = vmatmul.mubr.bf16.gmra.mrb[0].mxu0 %v827
        %v2982 = vpop.f32.mrb[0].mxu0
        %v2983 = vadd.f32 %v2940, %v2982
        %v2984 = vpop.f32.mrb[0].mxu0
        %v2985 = vadd.f32 %v2942, %v2984
        %v2986 = vpop.f32.mrb[0].mxu0
        %v2987 = vadd.f32 %v2944, %v2986
        %v2988 = vpop.f32.mrb[0].mxu0
        %v2989 = vadd.f32 %v2946, %v2988
        %2990 = vdwg.mxu0
        %2991 = vmatprep.subr.bf16.mxu0 %v2234
        %2992 = vmatpush1.bf16.msra.mxu0 %v2233
        %2993 = vmatprep.subr.bf16.mxu0 %v2237
        %2994 = vmatpush1.bf16.msra.mxu0 %v2236
        %2995 = vmatprep.subr.bf16.mxu0 %v2240
        %2996 = vmatpush1.bf16.msra.mxu0 %v2239
        %2997 = vmatprep.subr.bf16.mxu0 %v2243
        %2998 = vmatpush1.bf16.msra.mxu0 %v2242
        %2999 = vmatprep.subr.bf16.mxu0 %v2246
        %3000 = vmatpush1.bf16.msra.mxu0 %v2245
        %3001 = vmatprep.subr.bf16.mxu0 %v2249
        %3002 = vmatpush1.bf16.msra.mxu0 %v2248
        %3003 = vmatprep.subr.bf16.mxu0 %v2252
        %3004 = vmatpush1.bf16.msra.mxu0 %v2251
        %3005 = vmatprep.subr.bf16.mxu0 %v2255
        %3006 = vmatpush1.bf16.msra.mxu0 %v2254
        %3007 = vmatprep.subr.bf16.mxu0 %v2258
        %3008 = vmatpush1.bf16.msra.mxu0 %v2257
        %3009 = vmatprep.subr.bf16.mxu0 %v2261
        %3010 = vmatpush1.bf16.msra.mxu0 %v2260
        %3011 = vmatprep.subr.bf16.mxu0 %v2264
        %3012 = vmatpush1.bf16.msra.mxu0 %v2263
        %3013 = vmatprep.subr.bf16.mxu0 %v2267
        %3014 = vmatpush1.bf16.msra.mxu0 %v2266
        %3015 = vmatprep.subr.bf16.mxu0 %v2270
        %3016 = vmatpush1.bf16.msra.mxu0 %v2269
        %3017 = vmatprep.subr.bf16.mxu0 %v2273
        %3018 = vmatpush1.bf16.msra.mxu0 %v2272
        %3019 = vmatprep.subr.bf16.mxu0 %v2276
        %3020 = vmatpush1.bf16.msra.mxu0 %v2275
        %3021 = vmatprep.subr.bf16.mxu0 %v2279
        %3022 = vmatpush1.bf16.msra.mxu0 %v2278
        %3023 = vmatprep.mubr.bf16.mxu0 %v830
        %3024 = vmatmul.mubr.bf16.gmra.mrb[0].mxu0 %v829
        %v3025 = vpop.f32.mrb[0].mxu0
        %v3026 = vadd.f32 %v2983, %v3025
        %v3027 = vpop.f32.mrb[0].mxu0
        %v3028 = vadd.f32 %v2985, %v3027
        %v3029 = vpop.f32.mrb[0].mxu0
        %v3030 = vadd.f32 %v2987, %v3029
        %v3031 = vpop.f32.mrb[0].mxu0
        %v3032 = vadd.f32 %v2989, %v3031
        %3033 = vdwg.mxu0
        %3034 = vmatprep.subr.bf16.mxu0 %v2282
        %3035 = vmatpush1.bf16.msra.mxu0 %v2281
        %3036 = vmatprep.subr.bf16.mxu0 %v2285
        %3037 = vmatpush1.bf16.msra.mxu0 %v2284
        %3038 = vmatprep.subr.bf16.mxu0 %v2288
        %3039 = vmatpush1.bf16.msra.mxu0 %v2287
        %3040 = vmatprep.subr.bf16.mxu0 %v2291
        %3041 = vmatpush1.bf16.msra.mxu0 %v2290
        %3042 = vmatprep.subr.bf16.mxu0 %v2294
        %3043 = vmatpush1.bf16.msra.mxu0 %v2293
        %3044 = vmatprep.subr.bf16.mxu0 %v2297
        %3045 = vmatpush1.bf16.msra.mxu0 %v2296
        %3046 = vmatprep.subr.bf16.mxu0 %v2300
        %3047 = vmatpush1.bf16.msra.mxu0 %v2299
        %3048 = vmatprep.subr.bf16.mxu0 %v2303
        %3049 = vmatpush1.bf16.msra.mxu0 %v2302
        %3050 = vmatprep.subr.bf16.mxu0 %v2306
        %3051 = vmatpush1.bf16.msra.mxu0 %v2305
        %3052 = vmatprep.subr.bf16.mxu0 %v2309
        %3053 = vmatpush1.bf16.msra.mxu0 %v2308
        %3054 = vmatprep.subr.bf16.mxu0 %v2312
        %3055 = vmatpush1.bf16.msra.mxu0 %v2311
        %3056 = vmatprep.subr.bf16.mxu0 %v2315
        %3057 = vmatpush1.bf16.msra.mxu0 %v2314
        %3058 = vmatprep.subr.bf16.mxu0 %v2318
        %3059 = vmatpush1.bf16.msra.mxu0 %v2317
        %3060 = vmatprep.subr.bf16.mxu0 %v2321
        %3061 = vmatpush1.bf16.msra.mxu0 %v2320
        %3062 = vmatprep.subr.bf16.mxu0 %v2324
        %3063 = vmatpush1.bf16.msra.mxu0 %v2323
        %3064 = vmatprep.subr.bf16.mxu0 %v2327
        %3065 = vmatpush1.bf16.msra.mxu0 %v2326
        %3066 = vmatprep.mubr.bf16.mxu0 %v832
        %3067 = vmatmul.mubr.bf16.gmra.mrb[0].mxu0 %v831
        %v3068 = vpop.f32.mrb[0].mxu0
        %v3069 = vadd.f32 %v3026, %v3068
        %v3070 = vpop.f32.mrb[0].mxu0
        %v3071 = vadd.f32 %v3028, %v3070
        %v3072 = vpop.f32.mrb[0].mxu0
        %v3073 = vadd.f32 %v3030, %v3072
        %v3074 = vpop.f32.mrb[0].mxu0
        %v3075 = vadd.f32 %v3032, %v3074
        %3076 = vdwg.mxu0
        %3077 = vmatprep.subr.bf16.mxu0 %v2330
        %3078 = vmatpush1.bf16.msra.mxu0 %v2329
        %3079 = vmatprep.subr.bf16.mxu0 %v2333
        %3080 = vmatpush1.bf16.msra.mxu0 %v2332
        %3081 = vmatprep.subr.bf16.mxu0 %v2336
        %3082 = vmatpush1.bf16.msra.mxu0 %v2335
        %3083 = vmatprep.subr.bf16.mxu0 %v2339
        %3084 = vmatpush1.bf16.msra.mxu0 %v2338
        %3085 = vmatprep.subr.bf16.mxu0 %v2342
        %3086 = vmatpush1.bf16.msra.mxu0 %v2341
        %3087 = vmatprep.subr.bf16.mxu0 %v2345
        %3088 = vmatpush1.bf16.msra.mxu0 %v2344
        %3089 = vmatprep.subr.bf16.mxu0 %v2348
        %3090 = vmatpush1.bf16.msra.mxu0 %v2347
        %3091 = vmatprep.subr.bf16.mxu0 %v2351
        %3092 = vmatpush1.bf16.msra.mxu0 %v2350
        %3093 = vmatprep.subr.bf16.mxu0 %v2354
        %3094 = vmatpush1.bf16.msra.mxu0 %v2353
        %3095 = vmatprep.subr.bf16.mxu0 %v2357
        %3096 = vmatpush1.bf16.msra.mxu0 %v2356
        %3097 = vmatprep.subr.bf16.mxu0 %v2360
        %3098 = vmatpush1.bf16.msra.mxu0 %v2359
        %3099 = vmatprep.subr.bf16.mxu0 %v2363
        %3100 = vmatpush1.bf16.msra.mxu0 %v2362
        %3101 = vmatprep.subr.bf16.mxu0 %v2366
        %3102 = vmatpush1.bf16.msra.mxu0 %v2365
        %3103 = vmatprep.subr.bf16.mxu0 %v2369
        %3104 = vmatpush1.bf16.msra.mxu0 %v2368
        %3105 = vmatprep.subr.bf16.mxu0 %v2372
        %3106 = vmatpush1.bf16.msra.mxu0 %v2371
        %3107 = vmatprep.subr.bf16.mxu0 %v2375
        %3108 = vmatpush1.bf16.msra.mxu0 %v2374
        %3109 = vmatprep.mubr.bf16.mxu0 %v834
        %3110 = vmatmul.mubr.bf16.gmra.mrb[0].mxu0 %v833
        %v3111 = vpop.f32.mrb[0].mxu0
        %v3112 = vadd.f32 %v3069, %v3111
        %v3113 = vpop.f32.mrb[0].mxu0
        %v3114 = vadd.f32 %v3071, %v3113
        %v3115 = vpop.f32.mrb[0].mxu0
        %v3116 = vadd.f32 %v3073, %v3115
        %v3117 = vpop.f32.mrb[0].mxu0
        %v3118 = vadd.f32 %v3075, %v3117
        %3119 = vdwg.mxu0
        %3120 = vmatprep.subr.bf16.mxu0 %v2378
        %3121 = vmatpush1.bf16.msra.mxu0 %v2377
        %3122 = vmatprep.subr.bf16.mxu0 %v2381
        %3123 = vmatpush1.bf16.msra.mxu0 %v2380
        %3124 = vmatprep.subr.bf16.mxu0 %v2384
        %3125 = vmatpush1.bf16.msra.mxu0 %v2383
        %3126 = vmatprep.subr.bf16.mxu0 %v2387
        %3127 = vmatpush1.bf16.msra.mxu0 %v2386
        %3128 = vmatprep.subr.bf16.mxu0 %v2390
        %3129 = vmatpush1.bf16.msra.mxu0 %v2389
        %3130 = vmatprep.subr.bf16.mxu0 %v2393
        %3131 = vmatpush1.bf16.msra.mxu0 %v2392
        %3132 = vmatprep.subr.bf16.mxu0 %v2396
        %3133 = vmatpush1.bf16.msra.mxu0 %v2395
        %3134 = vmatprep.subr.bf16.mxu0 %v2399
        %3135 = vmatpush1.bf16.msra.mxu0 %v2398
        %3136 = vmatprep.subr.bf16.mxu0 %v2402
        %3137 = vmatpush1.bf16.msra.mxu0 %v2401
        %3138 = vmatprep.subr.bf16.mxu0 %v2405
        %3139 = vmatpush1.bf16.msra.mxu0 %v2404
        %3140 = vmatprep.subr.bf16.mxu0 %v2408
        %3141 = vmatpush1.bf16.msra.mxu0 %v2407
        %3142 = vmatprep.subr.bf16.mxu0 %v2411
        %3143 = vmatpush1.bf16.msra.mxu0 %v2410
        %3144 = vmatprep.subr.bf16.mxu0 %v2414
        %3145 = vmatpush1.bf16.msra.mxu0 %v2413
        %3146 = vmatprep.subr.bf16.mxu0 %v2417
        %3147 = vmatpush1.bf16.msra.mxu0 %v2416
        %3148 = vmatprep.subr.bf16.mxu0 %v2420
        %3149 = vmatpush1.bf16.msra.mxu0 %v2419
        %3150 = vmatprep.subr.bf16.mxu0 %v2423
        %3151 = vmatpush1.bf16.msra.mxu0 %v2422
        %3152 = vmatprep.mubr.bf16.mxu0 %v836
        %3153 = vmatmul.mubr.bf16.gmra.mrb[0].mxu0 %v835
        %v3154 = vpop.f32.mrb[0].mxu0
        %v3155 = vadd.f32 %v3112, %v3154
        %v3156 = vpop.f32.mrb[0].mxu0
        %v3157 = vadd.f32 %v3114, %v3156
        %v3158 = vpop.f32.mrb[0].mxu0
        %v3159 = vadd.f32 %v3116, %v3158
        %v3160 = vpop.f32.mrb[0].mxu0
        %v3161 = vadd.f32 %v3118, %v3160
        %3162 = vdwg.mxu0
        %3163 = vmatprep.subr.bf16.mxu0 %v2426
        %3164 = vmatpush1.bf16.msra.mxu0 %v2425
        %3165 = vmatprep.subr.bf16.mxu0 %v2429
        %3166 = vmatpush1.bf16.msra.mxu0 %v2428
        %3167 = vmatprep.subr.bf16.mxu0 %v2432
        %3168 = vmatpush1.bf16.msra.mxu0 %v2431
        %3169 = vmatprep.subr.bf16.mxu0 %v2435
        %3170 = vmatpush1.bf16.msra.mxu0 %v2434
        %3171 = vmatprep.subr.bf16.mxu0 %v2438
        %3172 = vmatpush1.bf16.msra.mxu0 %v2437
        %3173 = vmatprep.subr.bf16.mxu0 %v2441
        %3174 = vmatpush1.bf16.msra.mxu0 %v2440
        %3175 = vmatprep.subr.bf16.mxu0 %v2444
        %3176 = vmatpush1.bf16.msra.mxu0 %v2443
        %3177 = vmatprep.subr.bf16.mxu0 %v2447
        %3178 = vmatpush1.bf16.msra.mxu0 %v2446
        %3179 = vmatprep.subr.bf16.mxu0 %v2450
        %3180 = vmatpush1.bf16.msra.mxu0 %v2449
        %3181 = vmatprep.subr.bf16.mxu0 %v2453
        %3182 = vmatpush1.bf16.msra.mxu0 %v2452
        %3183 = vmatprep.subr.bf16.mxu0 %v2456
        %3184 = vmatpush1.bf16.msra.mxu0 %v2455
        %3185 = vmatprep.subr.bf16.mxu0 %v2459
        %3186 = vmatpush1.bf16.msra.mxu0 %v2458
        %3187 = vmatprep.subr.bf16.mxu0 %v2462
        %3188 = vmatpush1.bf16.msra.mxu0 %v2461
        %3189 = vmatprep.subr.bf16.mxu0 %v2465
        %3190 = vmatpush1.bf16.msra.mxu0 %v2464
        %3191 = vmatprep.subr.bf16.mxu0 %v2468
        %3192 = vmatpush1.bf16.msra.mxu0 %v2467
        %3193 = vmatprep.subr.bf16.mxu0 %v2471
        %3194 = vmatpush1.bf16.msra.mxu0 %v2470
        %3195 = vmatprep.mubr.bf16.mxu0 %v838
        %3196 = vmatmul.mubr.bf16.gmra.mrb[0].mxu0 %v837
        %v3197 = vpop.f32.mrb[0].mxu0
        %v3198 = vadd.f32 %v3155, %v3197
        %v3199 = vpop.f32.mrb[0].mxu0
        %v3200 = vadd.f32 %v3157, %v3199
        %v3201 = vpop.f32.mrb[0].mxu0
        %v3202 = vadd.f32 %v3159, %v3201
        %v3203 = vpop.f32.mrb[0].mxu0
        %v3204 = vadd.f32 %v3161, %v3203
        %3205 = vdwg.mxu0
        %3206 = vmatprep.subr.bf16.mxu0 %v2474
        %3207 = vmatpush1.bf16.msra.mxu0 %v2473
        %3208 = vmatprep.subr.bf16.mxu0 %v2477
        %3209 = vmatpush1.bf16.msra.mxu0 %v2476
        %3210 = vmatprep.subr.bf16.mxu0 %v2480
        %3211 = vmatpush1.bf16.msra.mxu0 %v2479
        %3212 = vmatprep.subr.bf16.mxu0 %v2483
        %3213 = vmatpush1.bf16.msra.mxu0 %v2482
        %3214 = vmatprep.subr.bf16.mxu0 %v2486
        %3215 = vmatpush1.bf16.msra.mxu0 %v2485
        %3216 = vmatprep.subr.bf16.mxu0 %v2489
        %3217 = vmatpush1.bf16.msra.mxu0 %v2488
        %3218 = vmatprep.subr.bf16.mxu0 %v2492
        %3219 = vmatpush1.bf16.msra.mxu0 %v2491
        %3220 = vmatprep.subr.bf16.mxu0 %v2495
        %3221 = vmatpush1.bf16.msra.mxu0 %v2494
        %3222 = vmatprep.subr.bf16.mxu0 %v2498
        %3223 = vmatpush1.bf16.msra.mxu0 %v2497
        %3224 = vmatprep.subr.bf16.mxu0 %v2501
        %3225 = vmatpush1.bf16.msra.mxu0 %v2500
        %3226 = vmatprep.subr.bf16.mxu0 %v2504
        %3227 = vmatpush1.bf16.msra.mxu0 %v2503
        %3228 = vmatprep.subr.bf16.mxu0 %v2507
        %3229 = vmatpush1.bf16.msra.mxu0 %v2506
        %3230 = vmatprep.subr.bf16.mxu0 %v2510
        %3231 = vmatpush1.bf16.msra.mxu0 %v2509
        %3232 = vmatprep.subr.bf16.mxu0 %v2513
        %3233 = vmatpush1.bf16.msra.mxu0 %v2512
        %3234 = vmatprep.subr.bf16.mxu0 %v2516
        %3235 = vmatpush1.bf16.msra.mxu0 %v2515
        %3236 = vmatprep.subr.bf16.mxu0 %v2519
        %3237 = vmatpush1.bf16.msra.mxu0 %v2518
        %3238 = vmatprep.mubr.bf16.mxu0 %v840
        %3239 = vmatmul.mubr.bf16.gmra.mrb[0].mxu0 %v839
        %v3240 = vpop.f32.mrb[0].mxu0
        %v3241 = vadd.f32 %v3198, %v3240
        %v3242 = vpop.f32.mrb[0].mxu0
        %v3243 = vadd.f32 %v3200, %v3242
        %v3244 = vpop.f32.mrb[0].mxu0
        %v3245 = vadd.f32 %v3202, %v3244
        %v3246 = vpop.f32.mrb[0].mxu0
        %v3247 = vadd.f32 %v3204, %v3246
        %3248 = vdwg.mxu0
        %3249 = vmatprep.subr.bf16.mxu0 0
        %3250 = vmatpush1.bf16.msra.mxu0 %v2139
        %3251 = vmatprep.subr.bf16.mxu0 0
        %3252 = vmatpush1.bf16.msra.mxu0 %v2142
        %3253 = vmatprep.subr.bf16.mxu0 0
        %3254 = vmatpush1.bf16.msra.mxu0 %v2145
        %3255 = vmatprep.subr.bf16.mxu0 0
        %3256 = vmatpush1.bf16.msra.mxu0 %v2148
        %3257 = vmatprep.subr.bf16.mxu0 0
        %3258 = vmatpush1.bf16.msra.mxu0 %v2151
        %3259 = vmatprep.subr.bf16.mxu0 0
        %3260 = vmatpush1.bf16.msra.mxu0 %v2154
        %3261 = vmatprep.subr.bf16.mxu0 0
        %3262 = vmatpush1.bf16.msra.mxu0 %v2157
        %3263 = vmatprep.subr.bf16.mxu0 0
        %3264 = vmatpush1.bf16.msra.mxu0 %v2160
        %3265 = vmatprep.subr.bf16.mxu0 0
        %3266 = vmatpush1.bf16.msra.mxu0 %v2163
        %3267 = vmatprep.subr.bf16.mxu0 0
        %3268 = vmatpush1.bf16.msra.mxu0 %v2166
        %3269 = vmatprep.subr.bf16.mxu0 0
        %3270 = vmatpush1.bf16.msra.mxu0 %v2169
        %3271 = vmatprep.subr.bf16.mxu0 0
        %3272 = vmatpush1.bf16.msra.mxu0 %v2172
        %3273 = vmatprep.subr.bf16.mxu0 0
        %3274 = vmatpush1.bf16.msra.mxu0 %v2175
        %3275 = vmatprep.subr.bf16.mxu0 0
        %3276 = vmatpush1.bf16.msra.mxu0 %v2178
        %3277 = vmatprep.subr.bf16.mxu0 0
        %3278 = vmatpush1.bf16.msra.mxu0 %v2181
        %3279 = vmatprep.subr.bf16.mxu0 0
        %3280 = vmatpush1.bf16.msra.mxu0 %v2184
        %3281 = vmatprep.mubr.bf16.mxu0 %v826
        %3282 = vmatmul.mubr.bf16.gmra.mrb[0].mxu0 %v825
        %v3283 = vpop.f32.mrb[0].mxu0
        %v3284 = vadd.f32 0.0, %v3283
        %v3285 = vpop.f32.mrb[0].mxu0
        %v3286 = vpop.f32.mrb[0].mxu0
        %v3287 = vadd.f32 0.0, %v3286
        %v3288 = vpop.f32.mrb[0].mxu0
        %3289 = vdwg.mxu0
        %3290 = vmatprep.subr.bf16.mxu0 0
        %3291 = vmatpush1.bf16.msra.mxu0 %v2187
        %3292 = vmatprep.subr.bf16.mxu0 0
        %3293 = vmatpush1.bf16.msra.mxu0 %v2190
        %3294 = vmatprep.subr.bf16.mxu0 0
        %3295 = vmatpush1.bf16.msra.mxu0 %v2193
        %3296 = vmatprep.subr.bf16.mxu0 0
        %3297 = vmatpush1.bf16.msra.mxu0 %v2196
        %3298 = vmatprep.subr.bf16.mxu0 0
        %3299 = vmatpush1.bf16.msra.mxu0 %v2199
        %3300 = vmatprep.subr.bf16.mxu0 0
        %3301 = vmatpush1.bf16.msra.mxu0 %v2202
        %3302 = vmatprep.subr.bf16.mxu0 0
        %3303 = vmatpush1.bf16.msra.mxu0 %v2205
        %3304 = vmatprep.subr.bf16.mxu0 0
        %3305 = vmatpush1.bf16.msra.mxu0 %v2208
        %3306 = vmatprep.subr.bf16.mxu0 0
        %3307 = vmatpush1.bf16.msra.mxu0 %v2211
        %3308 = vmatprep.subr.bf16.mxu0 0
        %3309 = vmatpush1.bf16.msra.mxu0 %v2214
        %3310 = vmatprep.subr.bf16.mxu0 0
        %3311 = vmatpush1.bf16.msra.mxu0 %v2217
        %3312 = vmatprep.subr.bf16.mxu0 0
        %3313 = vmatpush1.bf16.msra.mxu0 %v2220
        %3314 = vmatprep.subr.bf16.mxu0 0
        %3315 = vmatpush1.bf16.msra.mxu0 %v2223
        %3316 = vmatprep.subr.bf16.mxu0 0
        %3317 = vmatpush1.bf16.msra.mxu0 %v2226
        %3318 = vmatprep.subr.bf16.mxu0 0
        %3319 = vmatpush1.bf16.msra.mxu0 %v2229
        %3320 = vmatprep.subr.bf16.mxu0 0
        %3321 = vmatpush1.bf16.msra.mxu0 %v2232
        %3322 = vmatprep.mubr.bf16.mxu0 %v828
        %3323 = vmatmul.mubr.bf16.gmra.mrb[0].mxu0 %v827
        %v3324 = vpop.f32.mrb[0].mxu0
        %v3325 = vadd.f32 %v3284, %v3324
        %v3326 = vpop.f32.mrb[0].mxu0
        %v3327 = vpop.f32.mrb[0].mxu0
        %v3328 = vadd.f32 %v3287, %v3327
        %v3329 = vpop.f32.mrb[0].mxu0
        %3330 = vdwg.mxu0
        %3331 = vmatprep.subr.bf16.mxu0 0
        %3332 = vmatpush1.bf16.msra.mxu0 %v2235
        %3333 = vmatprep.subr.bf16.mxu0 0
        %3334 = vmatpush1.bf16.msra.mxu0 %v2238
        %3335 = vmatprep.subr.bf16.mxu0 0
        %3336 = vmatpush1.bf16.msra.mxu0 %v2241
        %3337 = vmatprep.subr.bf16.mxu0 0
        %3338 = vmatpush1.bf16.msra.mxu0 %v2244
        %3339 = vmatprep.subr.bf16.mxu0 0
        %3340 = vmatpush1.bf16.msra.mxu0 %v2247
        %3341 = vmatprep.subr.bf16.mxu0 0
        %3342 = vmatpush1.bf16.msra.mxu0 %v2250
        %3343 = vmatprep.subr.bf16.mxu0 0
        %3344 = vmatpush1.bf16.msra.mxu0 %v2253
        %3345 = vmatprep.subr.bf16.mxu0 0
        %3346 = vmatpush1.bf16.msra.mxu0 %v2256
        %3347 = vmatprep.subr.bf16.mxu0 0
        %3348 = vmatpush1.bf16.msra.mxu0 %v2259
        %3349 = vmatprep.subr.bf16.mxu0 0
        %3350 = vmatpush1.bf16.msra.mxu0 %v2262
        %3351 = vmatprep.subr.bf16.mxu0 0
        %3352 = vmatpush1.bf16.msra.mxu0 %v2265
        %3353 = vmatprep.subr.bf16.mxu0 0
        %3354 = vmatpush1.bf16.msra.mxu0 %v2268
        %3355 = vmatprep.subr.bf16.mxu0 0
        %3356 = vmatpush1.bf16.msra.mxu0 %v2271
        %3357 = vmatprep.subr.bf16.mxu0 0
        %3358 = vmatpush1.bf16.msra.mxu0 %v2274
        %3359 = vmatprep.subr.bf16.mxu0 0
        %3360 = vmatpush1.bf16.msra.mxu0 %v2277
        %3361 = vmatprep.subr.bf16.mxu0 0
        %3362 = vmatpush1.bf16.msra.mxu0 %v2280
        %3363 = vmatprep.mubr.bf16.mxu0 %v830
        %3364 = vmatmul.mubr.bf16.gmra.mrb[0].mxu0 %v829
        %v3365 = vpop.f32.mrb[0].mxu0
        %v3366 = vadd.f32 %v3325, %v3365
        %v3367 = vpop.f32.mrb[0].mxu0
        %v3368 = vpop.f32.mrb[0].mxu0
        %v3369 = vadd.f32 %v3328, %v3368
        %v3370 = vpop.f32.mrb[0].mxu0
        %3371 = vdwg.mxu0
        %3372 = vmatprep.subr.bf16.mxu0 0
        %3373 = vmatpush1.bf16.msra.mxu0 %v2283
        %3374 = vmatprep.subr.bf16.mxu0 0
        %3375 = vmatpush1.bf16.msra.mxu0 %v2286
        %3376 = vmatprep.subr.bf16.mxu0 0
        %3377 = vmatpush1.bf16.msra.mxu0 %v2289
        %3378 = vmatprep.subr.bf16.mxu0 0
        %3379 = vmatpush1.bf16.msra.mxu0 %v2292
        %3380 = vmatprep.subr.bf16.mxu0 0
        %3381 = vmatpush1.bf16.msra.mxu0 %v2295
        %3382 = vmatprep.subr.bf16.mxu0 0
        %3383 = vmatpush1.bf16.msra.mxu0 %v2298
        %3384 = vmatprep.subr.bf16.mxu0 0
        %3385 = vmatpush1.bf16.msra.mxu0 %v2301
        %3386 = vmatprep.subr.bf16.mxu0 0
        %3387 = vmatpush1.bf16.msra.mxu0 %v2304
        %3388 = vmatprep.subr.bf16.mxu0 0
        %3389 = vmatpush1.bf16.msra.mxu0 %v2307
        %3390 = vmatprep.subr.bf16.mxu0 0
        %3391 = vmatpush1.bf16.msra.mxu0 %v2310
        %3392 = vmatprep.subr.bf16.mxu0 0
        %3393 = vmatpush1.bf16.msra.mxu0 %v2313
        %3394 = vmatprep.subr.bf16.mxu0 0
        %3395 = vmatpush1.bf16.msra.mxu0 %v2316
        %3396 = vmatprep.subr.bf16.mxu0 0
        %3397 = vmatpush1.bf16.msra.mxu0 %v2319
        %3398 = vmatprep.subr.bf16.mxu0 0
        %3399 = vmatpush1.bf16.msra.mxu0 %v2322
        %3400 = vmatprep.subr.bf16.mxu0 0
        %3401 = vmatpush1.bf16.msra.mxu0 %v2325
        %3402 = vmatprep.subr.bf16.mxu0 0
        %3403 = vmatpush1.bf16.msra.mxu0 %v2328
        %3404 = vmatprep.mubr.bf16.mxu0 %v832
        %3405 = vmatmul.mubr.bf16.gmra.mrb[0].mxu0 %v831
        %v3406 = vpop.f32.mrb[0].mxu0
        %v3407 = vadd.f32 %v3366, %v3406
        %v3408 = vpop.f32.mrb[0].mxu0
        %v3409 = vpop.f32.mrb[0].mxu0
        %v3410 = vadd.f32 %v3369, %v3409
        %v3411 = vpop.f32.mrb[0].mxu0
        %3412 = vdwg.mxu0
        %3413 = vmatprep.subr.bf16.mxu0 0
        %3414 = vmatpush1.bf16.msra.mxu0 %v2331
        %3415 = vmatprep.subr.bf16.mxu0 0
        %3416 = vmatpush1.bf16.msra.mxu0 %v2334
        %3417 = vmatprep.subr.bf16.mxu0 0
        %3418 = vmatpush1.bf16.msra.mxu0 %v2337
        %3419 = vmatprep.subr.bf16.mxu0 0
        %3420 = vmatpush1.bf16.msra.mxu0 %v2340
        %3421 = vmatprep.subr.bf16.mxu0 0
        %3422 = vmatpush1.bf16.msra.mxu0 %v2343
        %3423 = vmatprep.subr.bf16.mxu0 0
        %3424 = vmatpush1.bf16.msra.mxu0 %v2346
        %3425 = vmatprep.subr.bf16.mxu0 0
        %3426 = vmatpush1.bf16.msra.mxu0 %v2349
        %3427 = vmatprep.subr.bf16.mxu0 0
        %3428 = vmatpush1.bf16.msra.mxu0 %v2352
        %3429 = vmatprep.subr.bf16.mxu0 0
        %3430 = vmatpush1.bf16.msra.mxu0 %v2355
        %3431 = vmatprep.subr.bf16.mxu0 0
        %3432 = vmatpush1.bf16.msra.mxu0 %v2358
        %3433 = vmatprep.subr.bf16.mxu0 0
        %3434 = vmatpush1.bf16.msra.mxu0 %v2361
        %3435 = vmatprep.subr.bf16.mxu0 0
        %3436 = vmatpush1.bf16.msra.mxu0 %v2364
        %3437 = vmatprep.subr.bf16.mxu0 0
        %3438 = vmatpush1.bf16.msra.mxu0 %v2367
        %3439 = vmatprep.subr.bf16.mxu0 0
        %3440 = vmatpush1.bf16.msra.mxu0 %v2370
        %3441 = vmatprep.subr.bf16.mxu0 0
        %3442 = vmatpush1.bf16.msra.mxu0 %v2373
        %3443 = vmatprep.subr.bf16.mxu0 0
        %3444 = vmatpush1.bf16.msra.mxu0 %v2376
        %3445 = vmatprep.mubr.bf16.mxu0 %v834
        %3446 = vmatmul.mubr.bf16.gmra.mrb[0].mxu0 %v833
        %v3447 = vpop.f32.mrb[0].mxu0
        %v3448 = vadd.f32 %v3407, %v3447
        %v3449 = vpop.f32.mrb[0].mxu0
        %v3450 = vpop.f32.mrb[0].mxu0
        %v3451 = vadd.f32 %v3410, %v3450
        %v3452 = vpop.f32.mrb[0].mxu0
        %3453 = vdwg.mxu0
        %3454 = vmatprep.subr.bf16.mxu0 0
        %3455 = vmatpush1.bf16.msra.mxu0 %v2379
        %3456 = vmatprep.subr.bf16.mxu0 0
        %3457 = vmatpush1.bf16.msra.mxu0 %v2382
        %3458 = vmatprep.subr.bf16.mxu0 0
        %3459 = vmatpush1.bf16.msra.mxu0 %v2385
        %3460 = vmatprep.subr.bf16.mxu0 0
        %3461 = vmatpush1.bf16.msra.mxu0 %v2388
        %3462 = vmatprep.subr.bf16.mxu0 0
        %3463 = vmatpush1.bf16.msra.mxu0 %v2391
        %3464 = vmatprep.subr.bf16.mxu0 0
        %3465 = vmatpush1.bf16.msra.mxu0 %v2394
        %3466 = vmatprep.subr.bf16.mxu0 0
        %3467 = vmatpush1.bf16.msra.mxu0 %v2397
        %3468 = vmatprep.subr.bf16.mxu0 0
        %3469 = vmatpush1.bf16.msra.mxu0 %v2400
        %3470 = vmatprep.subr.bf16.mxu0 0
        %3471 = vmatpush1.bf16.msra.mxu0 %v2403
        %3472 = vmatprep.subr.bf16.mxu0 0
        %3473 = vmatpush1.bf16.msra.mxu0 %v2406
        %3474 = vmatprep.subr.bf16.mxu0 0
        %3475 = vmatpush1.bf16.msra.mxu0 %v2409
        %3476 = vmatprep.subr.bf16.mxu0 0
        %3477 = vmatpush1.bf16.msra.mxu0 %v2412
        %3478 = vmatprep.subr.bf16.mxu0 0
        %3479 = vmatpush1.bf16.msra.mxu0 %v2415
        %3480 = vmatprep.subr.bf16.mxu0 0
        %3481 = vmatpush1.bf16.msra.mxu0 %v2418
        %3482 = vmatprep.subr.bf16.mxu0 0
        %3483 = vmatpush1.bf16.msra.mxu0 %v2421
        %3484 = vmatprep.subr.bf16.mxu0 0
        %3485 = vmatpush1.bf16.msra.mxu0 %v2424
        %3486 = vmatprep.mubr.bf16.mxu0 %v836
        %3487 = vmatmul.mubr.bf16.gmra.mrb[0].mxu0 %v835
        %v3488 = vpop.f32.mrb[0].mxu0
        %v3489 = vadd.f32 %v3448, %v3488
        %v3490 = vpop.f32.mrb[0].mxu0
        %v3491 = vpop.f32.mrb[0].mxu0
        %v3492 = vadd.f32 %v3451, %v3491
        %v3493 = vpop.f32.mrb[0].mxu0
        %3494 = vdwg.mxu0
        %3495 = vmatprep.subr.bf16.mxu0 0
        %3496 = vmatpush1.bf16.msra.mxu0 %v2427
        %3497 = vmatprep.subr.bf16.mxu0 0
        %3498 = vmatpush1.bf16.msra.mxu0 %v2430
        %3499 = vmatprep.subr.bf16.mxu0 0
        %3500 = vmatpush1.bf16.msra.mxu0 %v2433
        %3501 = vmatprep.subr.bf16.mxu0 0
        %3502 = vmatpush1.bf16.msra.mxu0 %v2436
        %3503 = vmatprep.subr.bf16.mxu0 0
        %3504 = vmatpush1.bf16.msra.mxu0 %v2439
        %3505 = vmatprep.subr.bf16.mxu0 0
        %3506 = vmatpush1.bf16.msra.mxu0 %v2442
        %3507 = vmatprep.subr.bf16.mxu0 0
        %3508 = vmatpush1.bf16.msra.mxu0 %v2445
        %3509 = vmatprep.subr.bf16.mxu0 0
        %3510 = vmatpush1.bf16.msra.mxu0 %v2448
        %3511 = vmatprep.subr.bf16.mxu0 0
        %3512 = vmatpush1.bf16.msra.mxu0 %v2451
        %3513 = vmatprep.subr.bf16.mxu0 0
        %3514 = vmatpush1.bf16.msra.mxu0 %v2454
        %3515 = vmatprep.subr.bf16.mxu0 0
        %3516 = vmatpush1.bf16.msra.mxu0 %v2457
        %3517 = vmatprep.subr.bf16.mxu0 0
        %3518 = vmatpush1.bf16.msra.mxu0 %v2460
        %3519 = vmatprep.subr.bf16.mxu0 0
        %3520 = vmatpush1.bf16.msra.mxu0 %v2463
        %3521 = vmatprep.subr.bf16.mxu0 0
        %3522 = vmatpush1.bf16.msra.mxu0 %v2466
        %3523 = vmatprep.subr.bf16.mxu0 0
        %3524 = vmatpush1.bf16.msra.mxu0 %v2469
        %3525 = vmatprep.subr.bf16.mxu0 0
        %3526 = vmatpush1.bf16.msra.mxu0 %v2472
        %3527 = vmatprep.mubr.bf16.mxu0 %v838
        %3528 = vmatmul.mubr.bf16.gmra.mrb[0].mxu0 %v837
        %v3529 = vpop.f32.mrb[0].mxu0
        %v3530 = vadd.f32 %v3489, %v3529
        %v3531 = vpop.f32.mrb[0].mxu0
        %v3532 = vpop.f32.mrb[0].mxu0
        %v3533 = vadd.f32 %v3492, %v3532
        %v3534 = vpop.f32.mrb[0].mxu0
        %3535 = vdwg.mxu0
        %3536 = vmatprep.subr.bf16.mxu0 0
        %3537 = vmatpush1.bf16.msra.mxu0 %v2475
        %3538 = vmatprep.subr.bf16.mxu0 0
        %3539 = vmatpush1.bf16.msra.mxu0 %v2478
        %3540 = vmatprep.subr.bf16.mxu0 0
        %3541 = vmatpush1.bf16.msra.mxu0 %v2481
        %3542 = vmatprep.subr.bf16.mxu0 0
        %3543 = vmatpush1.bf16.msra.mxu0 %v2484
        %3544 = vmatprep.subr.bf16.mxu0 0
        %3545 = vmatpush1.bf16.msra.mxu0 %v2487
        %3546 = vmatprep.subr.bf16.mxu0 0
        %3547 = vmatpush1.bf16.msra.mxu0 %v2490
        %3548 = vmatprep.subr.bf16.mxu0 0
        %3549 = vmatpush1.bf16.msra.mxu0 %v2493
        %3550 = vmatprep.subr.bf16.mxu0 0
        %3551 = vmatpush1.bf16.msra.mxu0 %v2496
        %3552 = vmatprep.subr.bf16.mxu0 0
        %3553 = vmatpush1.bf16.msra.mxu0 %v2499
        %3554 = vmatprep.subr.bf16.mxu0 0
        %3555 = vmatpush1.bf16.msra.mxu0 %v2502
        %3556 = vmatprep.subr.bf16.mxu0 0
        %3557 = vmatpush1.bf16.msra.mxu0 %v2505
        %3558 = vmatprep.subr.bf16.mxu0 0
        %3559 = vmatpush1.bf16.msra.mxu0 %v2508
        %3560 = vmatprep.subr.bf16.mxu0 0
        %3561 = vmatpush1.bf16.msra.mxu0 %v2511
        %3562 = vmatprep.subr.bf16.mxu0 0
        %3563 = vmatpush1.bf16.msra.mxu0 %v2514
        %3564 = vmatprep.subr.bf16.mxu0 0
        %3565 = vmatpush1.bf16.msra.mxu0 %v2517
        %3566 = vmatprep.subr.bf16.mxu0 0
        %3567 = vmatpush1.bf16.msra.mxu0 %v2520
        %3568 = vmatprep.mubr.bf16.mxu0 %v840
        %3569 = vmatmul.mubr.bf16.gmra.mrb[0].mxu0 %v839
        %v3570 = vpop.f32.mrb[0].mxu0
        %v3571 = vadd.f32 %v3530, %v3570
        %v3572 = vpop.f32.mrb[0].mxu0
        %v3573 = vpop.f32.mrb[0].mxu0
        %v3574 = vadd.f32 %v3533, %v3573
        %v3575 = vpop.f32.mrb[0].mxu0
        %3576 = vdwg.mxu0
        %v3577 = vadd.f32 %v243, %v3241
        %v3578 = vadd.f32 %v244, %v3243
        %v3579 = vadd.f32 %v245, %v3571
        %v3580 = vadd.f32 %v246, %v3245
        %v3581 = vadd.f32 %v247, %v3247
        %v3582 = vadd.f32 %v248, %v3574
        %3583 = vst [vmem:[#allocation7] sm:$0xff] %v3577
        %3584 = vst [vmem:[#allocation7 + $0x8] sm:$0xff] %v3578
        %3585 = vst [vmem:[#allocation7 + $0x10] sm:$0xff] %v3579
        %3586 = vst [vmem:[#allocation7 + $0x18] sm:$0xff] %v3580
        %3587 = vst [vmem:[#allocation7 + $0x20] sm:$0xff] %v3581
        %3588 = vst [vmem:[#allocation7 + $0x28] sm:$0xff] %v3582
        // Predicated region
        $region41: #{tpu_custom_call.1} parent=27 // pred_check
          %p3589 = pneg %p115
        $region42: #{tpu_custom_call.1} parent=27 // pred_check_branch
          %3591 = sbr.rel (%p3589) target = $region44
        $region43: #{tpu_custom_call.1} parent=27 // pred_region
          %s3592 = smul.u32 2, %s25
          %s3593 = smul.u32 3, %s26
          %s3595 = ssub.s32 768, 768
          %3596 = vsyncadd [#allocation4], %s3595
          %s3597 = smul.addr %s3592, 3
          %s3598 = sadd.s32 %s3593, %s3597
          %s3599 = smul.addr %s3598, 128
          %s3600 = scalar_lea.hbm %s2, %s3599
          %s3601 = sshll.u32 [#allocation7], 4
          %s3602 = int_to_ptr.vmem [resolvable:$true] %s3601
          %3607 = dma.vmem_to_hbm [thread:$0]  %s3602, 768, %s3600, [#allocation4], 384, 384, 24
        $region44: #{tpu_custom_call.1} parent=27 // pred_fallthru
          _
        // Predicated region
        $region45: #{tpu_custom_call.1} parent=27 // pred_check
          %p3608 = pneg %p115
        $region46: #{tpu_custom_call.1} parent=27 // pred_check_branch
          %3610 = sbr.rel (%p3608) target = $region48
        $region47: #{tpu_custom_call.1} parent=27 // pred_region
          %3611 = dma.done [#allocation4], 768
        $region48: #{tpu_custom_call.1} parent=27 // pred_fallthru
          _
      $region28: #{tpu_custom_call.1} parent=5 // pred_fallthru
        _
      %p3612 = scmp.le.s32.totalorder 2, %s15
      // Predicated region
      $region49: #{tpu_custom_call.1} parent=5 // pred_check
        %p3613 = pneg %p3612
      $region50: #{tpu_custom_call.1} parent=5 // pred_check_branch
        %3615 = sbr.rel (%p3613) target = $region52
      $region51: #{tpu_custom_call.1} parent=5 // pred_region
        %s3616 = ssub.s32 %s15, 2
      $region52: #{tpu_custom_call.1} parent=5 // pred_fallthru
        _
    $region6: #{tpu_custom_call.1} parent=1 // loop_footer
      %s19 = sadd.s32 1, %s15
    $region7: #{tpu_custom_call.1} parent=1 // loop_footer_branch
      %14 = sbr.rel target = $region3
    $region8: #{tpu_custom_call.1} parent=1 // loop_exit
      _
    %3617 = vsyncpa [#allocation3], 1
    %s3618 = scalar_lea.sflag [#allocation3], 1
    %3619 = vsyncpa %s3618, 1
    %3620 = vsyncpa [#allocation6], 1
    %s3621 = scalar_lea.sflag [#allocation6], 1
    %3622 = vsyncpa %s3621, 1
    %3623 = vsyncpa [#allocation4], 1
    %s3624 = scalar_lea.sflag [#allocation4], 1
    %3625 = vsyncpa %s3624, 1

</llo_original>
